<compile_context>
chip_gen: v5e
topology: v5e:2x2
jax: 0.10.0
libtpu: 0.0.40
codegen_flags: <defaults>
</compile_context>

<pallas_src>
import functools

import jax
import jax.numpy as jnp
import numpy as np
from jax.experimental import pallas as pl
from jax.experimental.pallas import tpu as pltpu


def _readout_kernel(node_ref, mask_ref,
                    w_lg_ref, w_lx_ref, b_logit_ref,
                    w_proj_ref, b_proj_ref,
                    w_ih_ref, b_ih_ref, w_hh_ref, b_hh_ref,
                    out_ref, *, num_timesteps, feat_size):
    F = feat_size
    x = node_ref[...]                         # (GB, N, F)
    GB, N, _ = x.shape
    m = mask_ref[...][..., None]              # (GB, N, 1)  1.0 valid / 0.0 pad
    xm = x * m                                # padded rows zeroed

    # g_feats = dgl.sum_nodes(g, 'hv')
    g_feat = jnp.sum(xm, axis=1)              # (GB, F)

    # flattened node rows for the projection matmul: one (GB*N, F) @ (F, F) dot
    x2 = xm.reshape(GB * N, F)

    for t in range(num_timesteps):
        # ---- GlobalPool.compute_logits on cat([broadcast(relu(g_feats)), node_feats]) ----
        rg = jnp.maximum(g_feat, 0.0)                                    # relu(g_feats), (GB, F)
        gz = jnp.sum(rg * w_lg_ref[t], axis=-1, keepdims=True)           # (GB, 1) graph half of logit
        zx = jnp.sum(x * w_lx_ref[t], axis=-1, keepdims=True)            # (GB, N, 1) node half
        logits = zx + gz[:, None, :] + b_logit_ref[t]                    # (GB, N, 1)
        logits = jnp.where(logits >= 0.0, logits, 0.01 * logits)         # LeakyReLU(0.01)

        # ---- dgl.softmax_nodes over each graph's nodes (masked) ----
        masked = jnp.where(m > 0.0, logits, jnp.float32(-1e30))
        mx = jnp.max(masked, axis=1, keepdims=True)                      # (GB, 1, 1)
        e = jnp.exp(masked - mx) * m
        denom = jnp.maximum(jnp.sum(e, axis=1, keepdims=True), 1e-30)    # guard all-pad graphs
        a = e / denom                                                    # (GB, N, 1)

        # ---- project_nodes: Dropout(0) -> Linear(F, F) as one batched matmul ----
        hv = jnp.dot(x2, w_proj_ref[t], preferred_element_type=jnp.float32)
        hv = hv.reshape(GB, N, F) + b_proj_ref[t]                        # (GB, N, F)

        # ---- dgl.sum_nodes(g, 'hv', 'a') then ELU ----
        g_repr = jnp.sum(a * hv, axis=1)                                 # (GB, F)
        ctx = jnp.where(g_repr > 0.0, g_repr,
                        jnp.exp(jnp.minimum(g_repr, 0.0)) - 1.0)         # ELU(alpha=1)

        # ---- GRUCell(context, g_feats) with fused r|z|n gate weights ----
        gi = jnp.dot(ctx, w_ih_ref[t], preferred_element_type=jnp.float32) + b_ih_ref[t]     # (GB, 3F)
        gh = jnp.dot(g_feat, w_hh_ref[t], preferred_element_type=jnp.float32) + b_hh_ref[t]  # (GB, 3F)
        ir, iz, inn = gi[:, 0:F], gi[:, F:2 * F], gi[:, 2 * F:3 * F]
        hr, hz, hn = gh[:, 0:F], gh[:, F:2 * F], gh[:, 2 * F:3 * F]
        r = jax.nn.sigmoid(ir + hr)
        z = jax.nn.sigmoid(iz + hz)
        n = jnp.tanh(inn + r * hn)
        g_feat = (1.0 - z) * n + z * g_feat                              # (GB, F)

    out_ref[...] = g_feat                                                # lane-dense (GB, F) block


def attentive_fp_readout(node_feats, node_mask, params, *, graphs_per_block=None):
    """node_feats: (G, N, F) f32; node_mask: (G, N) f32.  Returns (G, F) f32."""
    G, N, F = node_feats.shape
    T = params["w_lg"].shape[0]
    GB = graphs_per_block or G
    assert G % GB == 0, "G must be divisible by graphs_per_block"
    grid = (G // GB,)

    const3 = lambda g: (0, 0, 0)   # weights: whole (small) array resident every step

    out = pl.pallas_call(
        functools.partial(_readout_kernel, num_timesteps=T, feat_size=F),
        out_shape=jax.ShapeDtypeStruct((G, F), jnp.float32),
        grid=grid,
        in_specs=[
            pl.BlockSpec((GB, N, F), lambda g: (g, 0, 0)),           # node_feats tile
            pl.BlockSpec((GB, N), lambda g: (g, 0)),                 # mask tile (lane-dense, no width-1 dim)
            pl.BlockSpec((T, 1, F), const3),                         # w_lg  (graph half of logit weight)
            pl.BlockSpec((T, 1, F), const3),                         # w_lx  (node half of logit weight)
            pl.BlockSpec(memory_space=pltpu.MemorySpace.SMEM),       # b_logit (T,) scalars
            pl.BlockSpec((T, F, F), const3),                         # w_proj (in, out)
            pl.BlockSpec((T, 1, F), const3),                         # b_proj
            pl.BlockSpec((T, F, 3 * F), const3),                     # w_ih fused gates (in, 3*out)
            pl.BlockSpec((T, 1, 3 * F), const3),                     # b_ih fused
            pl.BlockSpec((T, F, 3 * F), const3),                     # w_hh fused gates
            pl.BlockSpec((T, 1, 3 * F), const3),                     # b_hh fused
        ],
        out_specs=pl.BlockSpec((GB, F), lambda g: (g, 0)),
        compiler_params=pltpu.CompilerParams(
            dimension_semantics=("parallel",)),                      # shards graph blocks across TCs (v7x)
    )(node_feats, node_mask.astype(jnp.float32),
      params["w_lg"], params["w_lx"], params["b_logit"],
      params["w_proj"], params["b_proj"],
      params["w_ih"], params["b_ih"], params["w_hh"], params["b_hh"])
    return out


def init_params(key, feat_size, num_timesteps=2, scale=0.1):
    F, T = feat_size, num_timesteps
    ks = jax.random.split(key, 9)
    return {
        # compute_logits Linear(2F, 1): weight split into [graph-part | node-part]
        "w_lg": scale * jax.random.normal(ks[0], (T, 1, F), jnp.float32),
        "w_lx": scale * jax.random.normal(ks[1], (T, 1, F), jnp.float32),
        "b_logit": scale * jax.random.normal(ks[2], (T,), jnp.float32),
        # project_nodes Linear(F, F), stored (in, out)
        "w_proj": scale * jax.random.normal(ks[3], (T, F, F), jnp.float32),
        "b_proj": scale * jax.random.normal(ks[4], (T, 1, F), jnp.float32),
        # GRUCell with gates (r, z, n) concatenated on the output axis: (in, 3*out)
        "w_ih": scale * jax.random.normal(ks[5], (T, F, 3 * F), jnp.float32),
        "b_ih": scale * jax.random.normal(ks[6], (T, 1, 3 * F), jnp.float32),
        "w_hh": scale * jax.random.normal(ks[7], (T, F, 3 * F), jnp.float32),
        "b_hh": scale * jax.random.normal(ks[8], (T, 1, 3 * F), jnp.float32),
    }


def reference(node_feats, node_mask, params):
    """Pure-JAX reference of the same forward (for verification)."""
    F = node_feats.shape[-1]
    m = node_mask[..., None]
    g_feats = jnp.sum(node_feats * m, axis=1)                          # (G, F)
    T = params["w_lg"].shape[0]
    for t in range(T):
        rg = jnp.maximum(g_feats, 0.0)
        gz = jnp.sum(rg * params["w_lg"][t, 0], axis=-1, keepdims=True)           # (G, 1)
        zx = jnp.sum(node_feats * params["w_lx"][t, 0], axis=-1, keepdims=True)   # (G, N, 1)
        logits = zx + gz[:, None, :] + params["b_logit"][t]
        logits = jnp.where(logits >= 0.0, logits, 0.01 * logits)
        masked = jnp.where(m > 0.0, logits, -1e30)
        mx = jnp.max(masked, axis=1, keepdims=True)
        e = jnp.exp(masked - mx) * m
        a = e / jnp.maximum(jnp.sum(e, axis=1, keepdims=True), 1e-30)
        hv = jnp.einsum("gnf,fo->gno", node_feats * m, params["w_proj"][t]) + params["b_proj"][t, 0]
        g_repr = jnp.sum(a * hv, axis=1)
        ctx = jnp.where(g_repr > 0.0, g_repr, jnp.exp(jnp.minimum(g_repr, 0.0)) - 1.0)
        gi = ctx @ params["w_ih"][t] + params["b_ih"][t, 0]
        gh = g_feats @ params["w_hh"][t] + params["b_hh"][t, 0]
        ir, iz, inn = gi[:, :F], gi[:, F:2 * F], gi[:, 2 * F:]
        hr, hz, hn = gh[:, :F], gh[:, F:2 * F], gh[:, 2 * F:]
        r = jax.nn.sigmoid(ir + hr)
        z = jax.nn.sigmoid(iz + hz)
        n = jnp.tanh(inn + r * hn)
        g_feats = (1.0 - z) * n + z * g_feats
    return g_feats


if __name__ == "__main__":
    FEAT = 32          # feat_size
    TIMESTEPS = 2      # num_timesteps
    G, N = 16, 8       # 16 graphs, up to 8 nodes each (padded)
    GB = 8             # graphs per grid step (multiple of 8 -> aligned second-minor dim)

    key = jax.random.PRNGKey(0)
    k_feat, k_len, k_par = jax.random.split(key, 3)
    node_feats = jax.random.normal(k_feat, (G, N, FEAT), jnp.float32)
    counts = jax.random.randint(k_len, (G,), 3, N + 1)                  # 3..N real nodes per graph
    node_mask = (jnp.arange(N)[None, :] < counts[:, None]).astype(jnp.float32)
    node_feats = node_feats * node_mask[..., None]                      # zero the padding

    params = init_params(k_par, FEAT, TIMESTEPS)

    # TODO(synk): get_node_weight=True path (returning per-timestep node weights) not emitted.
    out = attentive_fp_readout(node_feats, node_mask, params, graphs_per_block=GB)
    out = jax.block_until_ready(out)

    ref = jax.block_until_ready(reference(node_feats, node_mask, params))
    np.testing.assert_allclose(np.asarray(out), np.asarray(ref), rtol=1e-4, atol=1e-5)
    assert out.shape == (G, FEAT) and out.dtype == jnp.float32

    print("KERNEL_OK")
</pallas_src>

<mosaic_0001>
module attributes {stable_mosaic.version = 11 : i64} {
  func.func @_readout_kernel(%arg0: i32, %arg1: memref<8x8x32xf32, #tpu.memory_space<vmem>>, %arg2: memref<8x8xf32, #tpu.memory_space<vmem>>, %arg3: memref<2x1x32xf32, #tpu.memory_space<vmem>>, %arg4: memref<2x1x32xf32, #tpu.memory_space<vmem>>, %arg5: memref<2xf32, #tpu.memory_space<smem>>, %arg6: memref<2x32x32xf32, #tpu.memory_space<vmem>>, %arg7: memref<2x1x32xf32, #tpu.memory_space<vmem>>, %arg8: memref<2x32x96xf32, #tpu.memory_space<vmem>>, %arg9: memref<2x1x96xf32, #tpu.memory_space<vmem>>, %arg10: memref<2x32x96xf32, #tpu.memory_space<vmem>>, %arg11: memref<2x1x96xf32, #tpu.memory_space<vmem>>, %arg12: memref<8x32xf32, #tpu.memory_space<vmem>>) attributes {dimension_semantics = [#tpu.dimension_semantics<parallel>], iteration_bounds = array<i64: 2>, scalar_prefetch = 0 : i64, scratch_operands = 0 : i64, tpu.core_type = #tpu.core_type<tc>, window_params = [{transform_indices = @transform_0, window_bounds = array<i64: 8, 8, 32>}, {transform_indices = @transform_1, window_bounds = array<i64: 8, 8>}, {pipeline_mode = #tpu.pipeline_mode<synchronous>, transform_indices = @transform_2, window_bounds = array<i64: 2, 1, 32>}, {pipeline_mode = #tpu.pipeline_mode<synchronous>, transform_indices = @transform_3, window_bounds = array<i64: 2, 1, 32>}, {transform_indices = @transform_4, window_bounds = array<i64: 2>}, {pipeline_mode = #tpu.pipeline_mode<synchronous>, transform_indices = @transform_5, window_bounds = array<i64: 2, 32, 32>}, {pipeline_mode = #tpu.pipeline_mode<synchronous>, transform_indices = @transform_6, window_bounds = array<i64: 2, 1, 32>}, {pipeline_mode = #tpu.pipeline_mode<synchronous>, transform_indices = @transform_7, window_bounds = array<i64: 2, 32, 96>}, {pipeline_mode = #tpu.pipeline_mode<synchronous>, transform_indices = @transform_8, window_bounds = array<i64: 2, 1, 96>}, {pipeline_mode = #tpu.pipeline_mode<synchronous>, transform_indices = @transform_9, window_bounds = array<i64: 2, 32, 96>}, {pipeline_mode = #tpu.pipeline_mode<synchronous>, transform_indices = @transform_10, window_bounds = array<i64: 2, 1, 96>}, {transform_indices = @transform_11, window_bounds = array<i64: 8, 32>}]} {
    %c0 = arith.constant 0 : index
    %c0_0 = arith.constant 0 : index
    %c0_1 = arith.constant 0 : index
    %0 = vector.load %arg1[%c0, %c0_0, %c0_1] : memref<8x8x32xf32, #tpu.memory_space<vmem>>, vector<8x8x32xf32>
    %c0_2 = arith.constant 0 : index
    %c0_3 = arith.constant 0 : index
    %1 = vector.load %arg2[%c0_2, %c0_3] : memref<8x8xf32, #tpu.memory_space<vmem>>, vector<8x8xf32>
    %2 = vector.shape_cast %1 : vector<8x8xf32> to vector<8x8x1xf32>
    %3 = vector.broadcast %2 : vector<8x8x1xf32> to vector<8x8x32xf32>
    %4 = arith.mulf %0, %3 : vector<8x8x32xf32>
    %cst = arith.constant dense<0.000000e+00> : vector<8x32xf32>
    %5 = vector.multi_reduction <add>, %4, %cst [1] : vector<8x8x32xf32> to vector<8x32xf32>
    %6 = vector.shape_cast %4 : vector<8x8x32xf32> to vector<64x32xf32>
    %cst_4 = arith.constant 0.000000e+00 : f32
    %7 = vector.broadcast %cst_4 : f32 to vector<8x32xf32>
    %8 = arith.maximumf %5, %7 : vector<8x32xf32>
    %c0_5 = arith.constant 0 : index
    %c0_6 = arith.constant 0 : index
    %c0_7 = arith.constant 0 : index
    %9 = vector.load %arg3[%c0_5, %c0_6, %c0_7] : memref<2x1x32xf32, #tpu.memory_space<vmem>>, vector<1x1x32xf32>
    %10 = vector.shape_cast %9 : vector<1x1x32xf32> to vector<1x32xf32>
    %11 = vector.broadcast %10 : vector<1x32xf32> to vector<8x32xf32>
    %12 = arith.mulf %8, %11 : vector<8x32xf32>
    %cst_8 = arith.constant dense<0.000000e+00> : vector<8xf32>
    %13 = vector.multi_reduction <add>, %12, %cst_8 [1] : vector<8x32xf32> to vector<8xf32>
    %14 = vector.shape_cast %13 : vector<8xf32> to vector<8x1xf32>
    %c0_9 = arith.constant 0 : index
    %c0_10 = arith.constant 0 : index
    %c0_11 = arith.constant 0 : index
    %15 = vector.load %arg4[%c0_9, %c0_10, %c0_11] : memref<2x1x32xf32, #tpu.memory_space<vmem>>, vector<1x1x32xf32>
    %16 = vector.shape_cast %15 : vector<1x1x32xf32> to vector<1x32xf32>
    %17 = vector.shape_cast %16 : vector<1x32xf32> to vector<1x1x32xf32>
    %18 = vector.broadcast %17 : vector<1x1x32xf32> to vector<8x8x32xf32>
    %19 = arith.mulf %0, %18 : vector<8x8x32xf32>
    %cst_12 = arith.constant dense<0.000000e+00> : vector<8x8xf32>
    %20 = vector.multi_reduction <add>, %19, %cst_12 [2] : vector<8x8x32xf32> to vector<8x8xf32>
    %21 = vector.shape_cast %20 : vector<8x8xf32> to vector<8x8x1xf32>
    %22 = vector.shape_cast %14 : vector<8x1xf32> to vector<8x1x1xf32>
    %23 = vector.broadcast %22 : vector<8x1x1xf32> to vector<8x8x1xf32>
    %24 = arith.addf %21, %23 : vector<8x8x1xf32>
    %c0_13 = arith.constant 0 : index
    %25 = memref.load %arg5[%c0_13] : memref<2xf32, #tpu.memory_space<smem>>
    %26 = vector.broadcast %25 : f32 to vector<8x8x1xf32>
    %27 = arith.addf %24, %26 : vector<8x8x1xf32>
    %cst_14 = arith.constant 0.000000e+00 : f32
    %28 = vector.broadcast %cst_14 : f32 to vector<8x8x1xf32>
    %29 = arith.cmpf oge, %27, %28 : vector<8x8x1xf32>
    %cst_15 = arith.constant 0.00999999977 : f32
    %30 = vector.broadcast %cst_15 : f32 to vector<8x8x1xf32>
    %31 = arith.mulf %30, %27 : vector<8x8x1xf32>
    %32 = arith.select %29, %27, %31 : vector<8x8x1xi1>, vector<8x8x1xf32>
    %cst_16 = arith.constant 0.000000e+00 : f32
    %33 = vector.broadcast %cst_16 : f32 to vector<8x8x1xf32>
    %34 = arith.cmpf ogt, %2, %33 : vector<8x8x1xf32>
    %cst_17 = arith.constant -1.000000e+30 : f32
    %35 = vector.broadcast %cst_17 : f32 to vector<8x8x1xf32>
    %36 = arith.select %34, %32, %35 : vector<8x8x1xi1>, vector<8x8x1xf32>
    %cst_18 = arith.constant dense<0xFF800000> : vector<8x1xf32>
    %37 = vector.multi_reduction <maximumf>, %36, %cst_18 [1] : vector<8x8x1xf32> to vector<8x1xf32>
    %38 = vector.shape_cast %37 : vector<8x1xf32> to vector<8x1x1xf32>
    %39 = vector.broadcast %38 : vector<8x1x1xf32> to vector<8x8x1xf32>
    %40 = arith.subf %36, %39 : vector<8x8x1xf32>
    %41 = math.exp %40 : vector<8x8x1xf32>
    %42 = arith.mulf %41, %2 : vector<8x8x1xf32>
    %cst_19 = arith.constant dense<0.000000e+00> : vector<8x1xf32>
    %43 = vector.multi_reduction <add>, %42, %cst_19 [1] : vector<8x8x1xf32> to vector<8x1xf32>
    %44 = vector.shape_cast %43 : vector<8x1xf32> to vector<8x1x1xf32>
    %cst_20 = arith.constant 1.000000e-30 : f32
    %45 = vector.broadcast %cst_20 : f32 to vector<8x1x1xf32>
    %46 = arith.maximumf %44, %45 : vector<8x1x1xf32>
    %47 = vector.broadcast %46 : vector<8x1x1xf32> to vector<8x8x1xf32>
    %48 = arith.divf %42, %47 : vector<8x8x1xf32>
    %c0_21 = arith.constant 0 : index
    %c0_22 = arith.constant 0 : index
    %c0_23 = arith.constant 0 : index
    %49 = vector.load %arg6[%c0_21, %c0_22, %c0_23] : memref<2x32x32xf32, #tpu.memory_space<vmem>>, vector<1x32x32xf32>
    %50 = vector.shape_cast %49 : vector<1x32x32xf32> to vector<32x32xf32>
    %cst_24 = arith.constant dense<0.000000e+00> : vector<64x32xf32>
    %51 = tpu.matmul %6, %50, %cst_24 {dimension_numbers = #tpu.dot_dimension_numbers<[1], [0], [0], [1], [0, 0, 1, 1], [], []>} : vector<64x32xf32>, vector<32x32xf32>, vector<64x32xf32> -> vector<64x32xf32>
    %52 = vector.shape_cast %51 : vector<64x32xf32> to vector<8x8x32xf32>
    %c0_25 = arith.constant 0 : index
    %c0_26 = arith.constant 0 : index
    %c0_27 = arith.constant 0 : index
    %53 = vector.load %arg7[%c0_25, %c0_26, %c0_27] : memref<2x1x32xf32, #tpu.memory_space<vmem>>, vector<1x1x32xf32>
    %54 = vector.shape_cast %53 : vector<1x1x32xf32> to vector<1x32xf32>
    %55 = vector.shape_cast %54 : vector<1x32xf32> to vector<1x1x32xf32>
    %56 = vector.broadcast %55 : vector<1x1x32xf32> to vector<8x8x32xf32>
    %57 = arith.addf %52, %56 : vector<8x8x32xf32>
    %58 = vector.broadcast %48 : vector<8x8x1xf32> to vector<8x8x32xf32>
    %59 = arith.mulf %58, %57 : vector<8x8x32xf32>
    %cst_28 = arith.constant dense<0.000000e+00> : vector<8x32xf32>
    %60 = vector.multi_reduction <add>, %59, %cst_28 [1] : vector<8x8x32xf32> to vector<8x32xf32>
    %cst_29 = arith.constant 0.000000e+00 : f32
    %61 = vector.broadcast %cst_29 : f32 to vector<8x32xf32>
    %62 = arith.cmpf ogt, %60, %61 : vector<8x32xf32>
    %cst_30 = arith.constant 0.000000e+00 : f32
    %63 = vector.broadcast %cst_30 : f32 to vector<8x32xf32>
    %64 = arith.minimumf %60, %63 : vector<8x32xf32>
    %65 = math.exp %64 : vector<8x32xf32>
    %cst_31 = arith.constant 1.000000e+00 : f32
    %66 = vector.broadcast %cst_31 : f32 to vector<8x32xf32>
    %67 = arith.subf %65, %66 : vector<8x32xf32>
    %68 = arith.select %62, %60, %67 : vector<8x32xi1>, vector<8x32xf32>
    %c0_32 = arith.constant 0 : index
    %c0_33 = arith.constant 0 : index
    %c0_34 = arith.constant 0 : index
    %69 = vector.load %arg8[%c0_32, %c0_33, %c0_34] : memref<2x32x96xf32, #tpu.memory_space<vmem>>, vector<1x32x96xf32>
    %70 = vector.shape_cast %69 : vector<1x32x96xf32> to vector<32x96xf32>
    %cst_35 = arith.constant dense<0.000000e+00> : vector<8x96xf32>
    %71 = tpu.matmul %68, %70, %cst_35 {dimension_numbers = #tpu.dot_dimension_numbers<[1], [0], [0], [1], [0, 0, 1, 1], [], []>} : vector<8x32xf32>, vector<32x96xf32>, vector<8x96xf32> -> vector<8x96xf32>
    %c0_36 = arith.constant 0 : index
    %c0_37 = arith.constant 0 : index
    %c0_38 = arith.constant 0 : index
    %72 = vector.load %arg9[%c0_36, %c0_37, %c0_38] : memref<2x1x96xf32, #tpu.memory_space<vmem>>, vector<1x1x96xf32>
    %73 = vector.shape_cast %72 : vector<1x1x96xf32> to vector<1x96xf32>
    %74 = vector.broadcast %73 : vector<1x96xf32> to vector<8x96xf32>
    %75 = arith.addf %71, %74 : vector<8x96xf32>
    %c0_39 = arith.constant 0 : index
    %c0_40 = arith.constant 0 : index
    %c0_41 = arith.constant 0 : index
    %76 = vector.load %arg10[%c0_39, %c0_40, %c0_41] : memref<2x32x96xf32, #tpu.memory_space<vmem>>, vector<1x32x96xf32>
    %77 = vector.shape_cast %76 : vector<1x32x96xf32> to vector<32x96xf32>
    %cst_42 = arith.constant dense<0.000000e+00> : vector<8x96xf32>
    %78 = tpu.matmul %5, %77, %cst_42 {dimension_numbers = #tpu.dot_dimension_numbers<[1], [0], [0], [1], [0, 0, 1, 1], [], []>} : vector<8x32xf32>, vector<32x96xf32>, vector<8x96xf32> -> vector<8x96xf32>
    %c0_43 = arith.constant 0 : index
    %c0_44 = arith.constant 0 : index
    %c0_45 = arith.constant 0 : index
    %79 = vector.load %arg11[%c0_43, %c0_44, %c0_45] : memref<2x1x96xf32, #tpu.memory_space<vmem>>, vector<1x1x96xf32>
    %80 = vector.shape_cast %79 : vector<1x1x96xf32> to vector<1x96xf32>
    %81 = vector.broadcast %80 : vector<1x96xf32> to vector<8x96xf32>
    %82 = arith.addf %78, %81 : vector<8x96xf32>
    %83 = vector.extract_strided_slice %75 {offsets = [0, 0], sizes = [8, 32], strides = [1, 1]} : vector<8x96xf32> to vector<8x32xf32>
    %84 = vector.extract_strided_slice %75 {offsets = [0, 32], sizes = [8, 32], strides = [1, 1]} : vector<8x96xf32> to vector<8x32xf32>
    %85 = vector.extract_strided_slice %75 {offsets = [0, 64], sizes = [8, 32], strides = [1, 1]} : vector<8x96xf32> to vector<8x32xf32>
    %86 = vector.extract_strided_slice %82 {offsets = [0, 0], sizes = [8, 32], strides = [1, 1]} : vector<8x96xf32> to vector<8x32xf32>
    %87 = vector.extract_strided_slice %82 {offsets = [0, 32], sizes = [8, 32], strides = [1, 1]} : vector<8x96xf32> to vector<8x32xf32>
    %88 = vector.extract_strided_slice %82 {offsets = [0, 64], sizes = [8, 32], strides = [1, 1]} : vector<8x96xf32> to vector<8x32xf32>
    %89 = arith.addf %83, %86 : vector<8x32xf32>
    %90 = arith.negf %89 : vector<8x32xf32>
    %91 = math.exp %90 : vector<8x32xf32>
    %cst_46 = arith.constant 1.000000e+00 : f32
    %92 = vector.broadcast %cst_46 : f32 to vector<8x32xf32>
    %93 = arith.addf %92, %91 : vector<8x32xf32>
    %94 = arith.divf %92, %93 : vector<8x32xf32>
    %95 = arith.addf %84, %87 : vector<8x32xf32>
    %96 = arith.negf %95 : vector<8x32xf32>
    %97 = math.exp %96 : vector<8x32xf32>
    %cst_47 = arith.constant 1.000000e+00 : f32
    %98 = vector.broadcast %cst_47 : f32 to vector<8x32xf32>
    %99 = arith.addf %98, %97 : vector<8x32xf32>
    %100 = arith.divf %98, %99 : vector<8x32xf32>
    %101 = arith.mulf %94, %88 : vector<8x32xf32>
    %102 = arith.addf %85, %101 : vector<8x32xf32>
    %103 = math.tanh %102 : vector<8x32xf32>
    %cst_48 = arith.constant 1.000000e+00 : f32
    %104 = vector.broadcast %cst_48 : f32 to vector<8x32xf32>
    %105 = arith.subf %104, %100 : vector<8x32xf32>
    %106 = arith.mulf %105, %103 : vector<8x32xf32>
    %107 = arith.mulf %100, %5 : vector<8x32xf32>
    %108 = arith.addf %106, %107 : vector<8x32xf32>
    %cst_49 = arith.constant 0.000000e+00 : f32
    %109 = vector.broadcast %cst_49 : f32 to vector<8x32xf32>
    %110 = arith.maximumf %108, %109 : vector<8x32xf32>
    %c1 = arith.constant 1 : index
    %c0_50 = arith.constant 0 : index
    %c0_51 = arith.constant 0 : index
    %111 = vector.load %arg3[%c1, %c0_50, %c0_51] : memref<2x1x32xf32, #tpu.memory_space<vmem>>, vector<1x1x32xf32>
    %112 = vector.shape_cast %111 : vector<1x1x32xf32> to vector<1x32xf32>
    %113 = vector.broadcast %112 : vector<1x32xf32> to vector<8x32xf32>
    %114 = arith.mulf %110, %113 : vector<8x32xf32>
    %cst_52 = arith.constant dense<0.000000e+00> : vector<8xf32>
    %115 = vector.multi_reduction <add>, %114, %cst_52 [1] : vector<8x32xf32> to vector<8xf32>
    %116 = vector.shape_cast %115 : vector<8xf32> to vector<8x1xf32>
    %c1_53 = arith.constant 1 : index
    %c0_54 = arith.constant 0 : index
    %c0_55 = arith.constant 0 : index
    %117 = vector.load %arg4[%c1_53, %c0_54, %c0_55] : memref<2x1x32xf32, #tpu.memory_space<vmem>>, vector<1x1x32xf32>
    %118 = vector.shape_cast %117 : vector<1x1x32xf32> to vector<1x32xf32>
    %119 = vector.shape_cast %118 : vector<1x32xf32> to vector<1x1x32xf32>
    %120 = vector.broadcast %119 : vector<1x1x32xf32> to vector<8x8x32xf32>
    %121 = arith.mulf %0, %120 : vector<8x8x32xf32>
    %cst_56 = arith.constant dense<0.000000e+00> : vector<8x8xf32>
    %122 = vector.multi_reduction <add>, %121, %cst_56 [2] : vector<8x8x32xf32> to vector<8x8xf32>
    %123 = vector.shape_cast %122 : vector<8x8xf32> to vector<8x8x1xf32>
    %124 = vector.shape_cast %116 : vector<8x1xf32> to vector<8x1x1xf32>
    %125 = vector.broadcast %124 : vector<8x1x1xf32> to vector<8x8x1xf32>
    %126 = arith.addf %123, %125 : vector<8x8x1xf32>
    %c1_57 = arith.constant 1 : index
    %127 = memref.load %arg5[%c1_57] : memref<2xf32, #tpu.memory_space<smem>>
    %128 = vector.broadcast %127 : f32 to vector<8x8x1xf32>
    %129 = arith.addf %126, %128 : vector<8x8x1xf32>
    %cst_58 = arith.constant 0.000000e+00 : f32
    %130 = vector.broadcast %cst_58 : f32 to vector<8x8x1xf32>
    %131 = arith.cmpf oge, %129, %130 : vector<8x8x1xf32>
    %cst_59 = arith.constant 0.00999999977 : f32
    %132 = vector.broadcast %cst_59 : f32 to vector<8x8x1xf32>
    %133 = arith.mulf %132, %129 : vector<8x8x1xf32>
    %134 = arith.select %131, %129, %133 : vector<8x8x1xi1>, vector<8x8x1xf32>
    %cst_60 = arith.constant 0.000000e+00 : f32
    %135 = vector.broadcast %cst_60 : f32 to vector<8x8x1xf32>
    %136 = arith.cmpf ogt, %2, %135 : vector<8x8x1xf32>
    %cst_61 = arith.constant -1.000000e+30 : f32
    %137 = vector.broadcast %cst_61 : f32 to vector<8x8x1xf32>
    %138 = arith.select %136, %134, %137 : vector<8x8x1xi1>, vector<8x8x1xf32>
    %cst_62 = arith.constant dense<0xFF800000> : vector<8x1xf32>
    %139 = vector.multi_reduction <maximumf>, %138, %cst_62 [1] : vector<8x8x1xf32> to vector<8x1xf32>
    %140 = vector.shape_cast %139 : vector<8x1xf32> to vector<8x1x1xf32>
    %141 = vector.broadcast %140 : vector<8x1x1xf32> to vector<8x8x1xf32>
    %142 = arith.subf %138, %141 : vector<8x8x1xf32>
    %143 = math.exp %142 : vector<8x8x1xf32>
    %144 = arith.mulf %143, %2 : vector<8x8x1xf32>
    %cst_63 = arith.constant dense<0.000000e+00> : vector<8x1xf32>
    %145 = vector.multi_reduction <add>, %144, %cst_63 [1] : vector<8x8x1xf32> to vector<8x1xf32>
    %146 = vector.shape_cast %145 : vector<8x1xf32> to vector<8x1x1xf32>
    %cst_64 = arith.constant 1.000000e-30 : f32
    %147 = vector.broadcast %cst_64 : f32 to vector<8x1x1xf32>
    %148 = arith.maximumf %146, %147 : vector<8x1x1xf32>
    %149 = vector.broadcast %148 : vector<8x1x1xf32> to vector<8x8x1xf32>
    %150 = arith.divf %144, %149 : vector<8x8x1xf32>
    %c1_65 = arith.constant 1 : index
    %c0_66 = arith.constant 0 : index
    %c0_67 = arith.constant 0 : index
    %151 = vector.load %arg6[%c1_65, %c0_66, %c0_67] : memref<2x32x32xf32, #tpu.memory_space<vmem>>, vector<1x32x32xf32>
    %152 = vector.shape_cast %151 : vector<1x32x32xf32> to vector<32x32xf32>
    %cst_68 = arith.constant dense<0.000000e+00> : vector<64x32xf32>
    %153 = tpu.matmul %6, %152, %cst_68 {dimension_numbers = #tpu.dot_dimension_numbers<[1], [0], [0], [1], [0, 0, 1, 1], [], []>} : vector<64x32xf32>, vector<32x32xf32>, vector<64x32xf32> -> vector<64x32xf32>
    %154 = vector.shape_cast %153 : vector<64x32xf32> to vector<8x8x32xf32>
    %c1_69 = arith.constant 1 : index
    %c0_70 = arith.constant 0 : index
    %c0_71 = arith.constant 0 : index
    %155 = vector.load %arg7[%c1_69, %c0_70, %c0_71] : memref<2x1x32xf32, #tpu.memory_space<vmem>>, vector<1x1x32xf32>
    %156 = vector.shape_cast %155 : vector<1x1x32xf32> to vector<1x32xf32>
    %157 = vector.shape_cast %156 : vector<1x32xf32> to vector<1x1x32xf32>
    %158 = vector.broadcast %157 : vector<1x1x32xf32> to vector<8x8x32xf32>
    %159 = arith.addf %154, %158 : vector<8x8x32xf32>
    %160 = vector.broadcast %150 : vector<8x8x1xf32> to vector<8x8x32xf32>
    %161 = arith.mulf %160, %159 : vector<8x8x32xf32>
    %cst_72 = arith.constant dense<0.000000e+00> : vector<8x32xf32>
    %162 = vector.multi_reduction <add>, %161, %cst_72 [1] : vector<8x8x32xf32> to vector<8x32xf32>
    %cst_73 = arith.constant 0.000000e+00 : f32
    %163 = vector.broadcast %cst_73 : f32 to vector<8x32xf32>
    %164 = arith.cmpf ogt, %162, %163 : vector<8x32xf32>
    %cst_74 = arith.constant 0.000000e+00 : f32
    %165 = vector.broadcast %cst_74 : f32 to vector<8x32xf32>
    %166 = arith.minimumf %162, %165 : vector<8x32xf32>
    %167 = math.exp %166 : vector<8x32xf32>
    %cst_75 = arith.constant 1.000000e+00 : f32
    %168 = vector.broadcast %cst_75 : f32 to vector<8x32xf32>
    %169 = arith.subf %167, %168 : vector<8x32xf32>
    %170 = arith.select %164, %162, %169 : vector<8x32xi1>, vector<8x32xf32>
    %c1_76 = arith.constant 1 : index
    %c0_77 = arith.constant 0 : index
    %c0_78 = arith.constant 0 : index
    %171 = vector.load %arg8[%c1_76, %c0_77, %c0_78] : memref<2x32x96xf32, #tpu.memory_space<vmem>>, vector<1x32x96xf32>
    %172 = vector.shape_cast %171 : vector<1x32x96xf32> to vector<32x96xf32>
    %cst_79 = arith.constant dense<0.000000e+00> : vector<8x96xf32>
    %173 = tpu.matmul %170, %172, %cst_79 {dimension_numbers = #tpu.dot_dimension_numbers<[1], [0], [0], [1], [0, 0, 1, 1], [], []>} : vector<8x32xf32>, vector<32x96xf32>, vector<8x96xf32> -> vector<8x96xf32>
    %c1_80 = arith.constant 1 : index
    %c0_81 = arith.constant 0 : index
    %c0_82 = arith.constant 0 : index
    %174 = vector.load %arg9[%c1_80, %c0_81, %c0_82] : memref<2x1x96xf32, #tpu.memory_space<vmem>>, vector<1x1x96xf32>
    %175 = vector.shape_cast %174 : vector<1x1x96xf32> to vector<1x96xf32>
    %176 = vector.broadcast %175 : vector<1x96xf32> to vector<8x96xf32>
    %177 = arith.addf %173, %176 : vector<8x96xf32>
    %c1_83 = arith.constant 1 : index
    %c0_84 = arith.constant 0 : index
    %c0_85 = arith.constant 0 : index
    %178 = vector.load %arg10[%c1_83, %c0_84, %c0_85] : memref<2x32x96xf32, #tpu.memory_space<vmem>>, vector<1x32x96xf32>
    %179 = vector.shape_cast %178 : vector<1x32x96xf32> to vector<32x96xf32>
    %cst_86 = arith.constant dense<0.000000e+00> : vector<8x96xf32>
    %180 = tpu.matmul %108, %179, %cst_86 {dimension_numbers = #tpu.dot_dimension_numbers<[1], [0], [0], [1], [0, 0, 1, 1], [], []>} : vector<8x32xf32>, vector<32x96xf32>, vector<8x96xf32> -> vector<8x96xf32>
    %c1_87 = arith.constant 1 : index
    %c0_88 = arith.constant 0 : index
    %c0_89 = arith.constant 0 : index
    %181 = vector.load %arg11[%c1_87, %c0_88, %c0_89] : memref<2x1x96xf32, #tpu.memory_space<vmem>>, vector<1x1x96xf32>
    %182 = vector.shape_cast %181 : vector<1x1x96xf32> to vector<1x96xf32>
    %183 = vector.broadcast %182 : vector<1x96xf32> to vector<8x96xf32>
    %184 = arith.addf %180, %183 : vector<8x96xf32>
    %185 = vector.extract_strided_slice %177 {offsets = [0, 0], sizes = [8, 32], strides = [1, 1]} : vector<8x96xf32> to vector<8x32xf32>
    %186 = vector.extract_strided_slice %177 {offsets = [0, 32], sizes = [8, 32], strides = [1, 1]} : vector<8x96xf32> to vector<8x32xf32>
    %187 = vector.extract_strided_slice %177 {offsets = [0, 64], sizes = [8, 32], strides = [1, 1]} : vector<8x96xf32> to vector<8x32xf32>
    %188 = vector.extract_strided_slice %184 {offsets = [0, 0], sizes = [8, 32], strides = [1, 1]} : vector<8x96xf32> to vector<8x32xf32>
    %189 = vector.extract_strided_slice %184 {offsets = [0, 32], sizes = [8, 32], strides = [1, 1]} : vector<8x96xf32> to vector<8x32xf32>
    %190 = vector.extract_strided_slice %184 {offsets = [0, 64], sizes = [8, 32], strides = [1, 1]} : vector<8x96xf32> to vector<8x32xf32>
    %191 = arith.addf %185, %188 : vector<8x32xf32>
    %192 = arith.negf %191 : vector<8x32xf32>
    %193 = math.exp %192 : vector<8x32xf32>
    %cst_90 = arith.constant 1.000000e+00 : f32
    %194 = vector.broadcast %cst_90 : f32 to vector<8x32xf32>
    %195 = arith.addf %194, %193 : vector<8x32xf32>
    %196 = arith.divf %194, %195 : vector<8x32xf32>
    %197 = arith.addf %186, %189 : vector<8x32xf32>
    %198 = arith.negf %197 : vector<8x32xf32>
    %199 = math.exp %198 : vector<8x32xf32>
    %cst_91 = arith.constant 1.000000e+00 : f32
    %200 = vector.broadcast %cst_91 : f32 to vector<8x32xf32>
    %201 = arith.addf %200, %199 : vector<8x32xf32>
    %202 = arith.divf %200, %201 : vector<8x32xf32>
    %203 = arith.mulf %196, %190 : vector<8x32xf32>
    %204 = arith.addf %187, %203 : vector<8x32xf32>
    %205 = math.tanh %204 : vector<8x32xf32>
    %cst_92 = arith.constant 1.000000e+00 : f32
    %206 = vector.broadcast %cst_92 : f32 to vector<8x32xf32>
    %207 = arith.subf %206, %202 : vector<8x32xf32>
    %208 = arith.mulf %207, %205 : vector<8x32xf32>
    %209 = arith.mulf %202, %108 : vector<8x32xf32>
    %210 = arith.addf %208, %209 : vector<8x32xf32>
    %c0_93 = arith.constant 0 : index
    %c0_94 = arith.constant 0 : index
    %211 = vector.load %arg12[%c0_93, %c0_94] : memref<8x32xf32, #tpu.memory_space<vmem>>, vector<8x32xf32>
    tpu.vector_store %arg12[%c0_93, %c0_94], %210 {strides = array<i32>} : memref<8x32xf32, #tpu.memory_space<vmem>>, vector<8x32xf32>,
    return
  }
  func.func @transform_0(%arg0: i32) -> (i32, i32, i32) {
    %c0_i32 = arith.constant 0 : i32
    %c0_i32_0 = arith.constant 0 : i32
    %c0_i32_1 = arith.constant 0 : i32
    return %arg0, %c0_i32, %c0_i32_0 : i32, i32, i32
  }
  func.func @transform_1(%arg0: i32) -> (i32, i32) {
    %c0_i32 = arith.constant 0 : i32
    %c0_i32_0 = arith.constant 0 : i32
    return %arg0, %c0_i32 : i32, i32
  }
  func.func @transform_2(%arg0: i32) -> (i32, i32, i32) {
    %c0_i32 = arith.constant 0 : i32
    %c0_i32_0 = arith.constant 0 : i32
    %c0_i32_1 = arith.constant 0 : i32
    %c0_i32_2 = arith.constant 0 : i32
    return %c0_i32, %c0_i32_0, %c0_i32_1 : i32, i32, i32
  }
  func.func @transform_3(%arg0: i32) -> (i32, i32, i32) {
    %c0_i32 = arith.constant 0 : i32
    %c0_i32_0 = arith.constant 0 : i32
    %c0_i32_1 = arith.constant 0 : i32
    %c0_i32_2 = arith.constant 0 : i32
    return %c0_i32, %c0_i32_0, %c0_i32_1 : i32, i32, i32
  }
  func.func @transform_4(%arg0: i32) -> i32 {
    %c0_i32 = arith.constant 0 : i32
    %c0_i32_0 = arith.constant 0 : i32
    return %c0_i32 : i32
  }
  func.func @transform_5(%arg0: i32) -> (i32, i32, i32) {
    %c0_i32 = arith.constant 0 : i32
    %c0_i32_0 = arith.constant 0 : i32
    %c0_i32_1 = arith.constant 0 : i32
    %c0_i32_2 = arith.constant 0 : i32
    return %c0_i32, %c0_i32_0, %c0_i32_1 : i32, i32, i32
  }
  func.func @transform_6(%arg0: i32) -> (i32, i32, i32) {
    %c0_i32 = arith.constant 0 : i32
    %c0_i32_0 = arith.constant 0 : i32
    %c0_i32_1 = arith.constant 0 : i32
    %c0_i32_2 = arith.constant 0 : i32
    return %c0_i32, %c0_i32_0, %c0_i32_1 : i32, i32, i32
  }
  func.func @transform_7(%arg0: i32) -> (i32, i32, i32) {
    %c0_i32 = arith.constant 0 : i32
    %c0_i32_0 = arith.constant 0 : i32
    %c0_i32_1 = arith.constant 0 : i32
    %c0_i32_2 = arith.constant 0 : i32
    return %c0_i32, %c0_i32_0, %c0_i32_1 : i32, i32, i32
  }
  func.func @transform_8(%arg0: i32) -> (i32, i32, i32) {
    %c0_i32 = arith.constant 0 : i32
    %c0_i32_0 = arith.constant 0 : i32
    %c0_i32_1 = arith.constant 0 : i32
    %c0_i32_2 = arith.constant 0 : i32
    return %c0_i32, %c0_i32_0, %c0_i32_1 : i32, i32, i32
  }
  func.func @transform_9(%arg0: i32) -> (i32, i32, i32) {
    %c0_i32 = arith.constant 0 : i32
    %c0_i32_0 = arith.constant 0 : i32
    %c0_i32_1 = arith.constant 0 : i32
    %c0_i32_2 = arith.constant 0 : i32
    return %c0_i32, %c0_i32_0, %c0_i32_1 : i32, i32, i32
  }
  func.func @transform_10(%arg0: i32) -> (i32, i32, i32) {
    %c0_i32 = arith.constant 0 : i32
    %c0_i32_0 = arith.constant 0 : i32
    %c0_i32_1 = arith.constant 0 : i32
    %c0_i32_2 = arith.constant 0 : i32
    return %c0_i32, %c0_i32_0, %c0_i32_1 : i32, i32, i32
  }
  func.func @transform_11(%arg0: i32) -> (i32, i32) {
    %c0_i32 = arith.constant 0 : i32
    %c0_i32_0 = arith.constant 0 : i32
    return %arg0, %c0_i32 : i32, i32
  }
}

</mosaic_0001>

<llo_original>
// kernel: tpu_custom_call.1
$region0: #{tpu_custom_call.1}
  #allocation0 [shape = 'u32[]', space=smem, size = 0x4, offset = 0x4, fixed_abs, tag = 'smem constant byte address 0x4 - core index']
  #allocation1 [shape = 'u32[72,128]{1,0:T(1,128)}', space=vmem, size = 0x9000, scoped, tag = 'internal scratch']
  %s0 = inlined_call_operand.hbm [shape: f32[16,8,32], index: 0, kind: input, shape index: {}]
  %s1 = inlined_call_operand.vmem [shape: f32[16,8], index: 1, kind: input, shape index: {}]
  %s2 = inlined_call_operand.vmem [shape: f32[2,1,32], index: 2, kind: input, shape index: {}]
  %s3 = inlined_call_operand.vmem [shape: f32[2,1,32], index: 3, kind: input, shape index: {}]
  %s4 = inlined_call_operand.vmem [shape: f32[2], index: 4, kind: input, shape index: {}]
  %s5 = inlined_call_operand.hbm [shape: f32[2,32,32], index: 5, kind: input, shape index: {}]
  %s6 = inlined_call_operand.vmem [shape: f32[2,1,32], index: 6, kind: input, shape index: {}]
  %s7 = inlined_call_operand.hbm [shape: f32[2,32,96], index: 7, kind: input, shape index: {}]
  %s8 = inlined_call_operand.vmem [shape: f32[2,1,96], index: 8, kind: input, shape index: {}]
  %s9 = inlined_call_operand.hbm [shape: f32[2,32,96], index: 9, kind: input, shape index: {}]
  %s10 = inlined_call_operand.vmem [shape: f32[2,1,96], index: 10, kind: input, shape index: {}]
  %s11 = inlined_call_operand.hbm [shape: f32[16,32], index: 11, kind: output, shape index: {}]
  %s12 = sld [smem:[#allocation0]]
  $region97: #{tpu_custom_call.1} parent=0
    _
  %s14 = ssub.s32 1, %s12
  %s15 = scalar_select 0, %s14, %s12
  $region1: #{tpu_custom_call.1} parent=0
    #allocation2 [shape = 'u8[65536]{0}', space=vmem, size = 0x10000, scoped, tag = 'input window, operand 0']
    #allocation3 [shape = 's32[2]{0}', space=sflag, size = 0x8, scoped, tag = 'scoped memory for tpu_custom_call.1']
    #allocation4 [shape = 's32[2]{0}', space=sflag, size = 0x8, scoped, tag = 'scoped memory for tpu_custom_call.1']
    #allocation5 [shape = 's32[2]{0}', space=sflag, size = 0x8, scoped, tag = 'scoped memory for tpu_custom_call.1']
    #allocation6 [shape = 'u8[512]{0}', space=smem, size = 0x200, scoped, tag = 'input window, operand 4, single buffered']
    #allocation7 [shape = 'u8[32768]{0}', space=vmem, size = 0x8000, scoped, tag = 'input window, operand 5, single buffered']
    #allocation8 [shape = 's32[1]{0}', space=sflag, size = 0x4, scoped, tag = 'scoped memory for tpu_custom_call.1']
    #allocation9 [shape = 'u8[32768]{0}', space=vmem, size = 0x8000, scoped, tag = 'input window, operand 7, single buffered']
    #allocation10 [shape = 'u8[32768]{0}', space=vmem, size = 0x8000, scoped, tag = 'input window, operand 9, single buffered']
    #allocation11 [shape = 's32[1]{0}', space=sflag, size = 0x4, scoped, tag = 'scoped memory for tpu_custom_call.1']
    #allocation12 [shape = 'u8[8192]{0}', space=vmem, size = 0x2000, scoped, tag = 'output window, operand 0']
    %16 = vsyncpa [#allocation3], 0
    %s17 = scalar_lea.sflag [#allocation3], 1
    %18 = vsyncpa %s17, 0
    %19 = vsyncpa [#allocation5], 0
    %20 = vsyncpa [#allocation8], 0
    %21 = vsyncpa [#allocation11], 0
    %22 = vsyncpa [#allocation4], 0
    %s23 = scalar_lea.sflag [#allocation4], 1
    %24 = vsyncpa %s23, 0
    loop: start=0, step=1, limit=4
    $region2: #{tpu_custom_call.1} parent=1 // loop_pre_header
      _
    $region3: #{tpu_custom_call.1} parent=1 // loop_header
      %s26 = sphi 0, %s30
      %p27 = scmp.ge.s32.totalorder %s26, 4
      %s36 = sphi 0, %s38
      %s39 = sphi 0, %s36
      %s40 = sphi 0, %s39
      %s56 = sphi 0, %s40
      %s62 = sphi 0, %s64
      %s65 = sphi 0, %s62
      %s66 = sphi 0, %s65
      %s82 = sphi 0, %s66
      %s86 = sphi 0, %s86
      %s88 = sphi 0, %s86
      %s89 = sphi 0, %s88
      %s103 = sphi 0, %s89
      %s107 = sphi 0, %s107
      %s109 = sphi 0, %s107
      %s110 = sphi 0, %s109
      %s124 = sphi 0, %s110
      %s128 = sphi 0, %s128
      %s130 = sphi 0, %s128
      %s131 = sphi 0, %s130
      %s145 = sphi 0, %s131
      %s149 = sphi 0, %s149
      %s151 = sphi 0, %s149
      %s152 = sphi 0, %s151
      %s166 = sphi 0, %s152
      %s170 = sphi 0, %s170
      %s172 = sphi 0, %s170
      %s173 = sphi 0, %s172
      %s187 = sphi 0, %s173
      %s191 = sphi 0, %s191
      %s193 = sphi 0, %s191
      %s194 = sphi 0, %s193
      %s208 = sphi 0, %s194
      %s212 = sphi 0, %s212
      %s214 = sphi 0, %s212
      %s215 = sphi 0, %s214
      %s229 = sphi 0, %s215
      %s233 = sphi 0, %s233
      %s235 = sphi 0, %s233
      %s236 = sphi 0, %s235
      %s250 = sphi 0, %s236
      %s254 = sphi 0, %s254
      %s256 = sphi 0, %s254
      %s257 = sphi 0, %s256
      %s271 = sphi 0, %s257
      %s277 = sphi 0, %s279
      %s280 = sphi 0, %s277
      %s281 = sphi 0, %s280
      %s297 = sphi 0, %s281
    $region4: #{tpu_custom_call.1} parent=1 // loop_header_branch
      %29 = sbr.rel (%p27) target = $region8
    $region5: #{tpu_custom_call.1} parent=1 // loop_body
      %s31 = ssub.s32 %s26, 1
      %s32 = ssub.s32 %s26, 2
      %s33 = sadd.s32 %s26, 1
      %s34 = ssub.s32 %s26, %s33
      %p35 = scmp.eq.s32.totalorder %s34, 0
      %s37 = sadd.s32 %s36, 1
      %s38 = scalar_select %p35, %s36, %s37
      %p41 = pneg %p35
      %p42 = scmp.eq.s32.totalorder %s26, 1
      %p43 = por %p41, %p42
      %p44 = scmp.ne.s32.totalorder %s36, %s39
      %p45 = scmp.eq.s32.totalorder %s26, 0
      %p46 = por %p44, %p45
      %p47 = scmp.ne.s32.totalorder %s36, %s39
      %p48 = scmp.eq.s32.totalorder %s31, 1
      %p49 = por %p47, %p48
      %p50 = scmp.ne.s32.totalorder %s39, %s40
      %p51 = scmp.eq.s32.totalorder %s31, 0
      %p52 = por %p50, %p51
      %p53 = scmp.ne.s32.totalorder %s39, %s40
      %p54 = scmp.eq.s32.totalorder %s32, 1
      %p55 = por %p53, %p54
      %p57 = scmp.ne.s32.totalorder %s40, %s56
      %p58 = scmp.eq.s32.totalorder %s32, 0
      %p59 = por %p57, %p58
      %s60 = ssub.s32 %s26, %s33
      %p61 = scmp.eq.s32.totalorder %s60, 0
      %s63 = sadd.s32 %s62, 1
      %s64 = scalar_select %p61, %s62, %s63
      %p67 = pneg %p61
      %p68 = scmp.eq.s32.totalorder %s26, 1
      %p69 = por %p67, %p68
      %p70 = scmp.ne.s32.totalorder %s62, %s65
      %p71 = scmp.eq.s32.totalorder %s26, 0
      %p72 = por %p70, %p71
      %p73 = scmp.ne.s32.totalorder %s62, %s65
      %p74 = scmp.eq.s32.totalorder %s31, 1
      %p75 = por %p73, %p74
      %p76 = scmp.ne.s32.totalorder %s65, %s66
      %p77 = scmp.eq.s32.totalorder %s31, 0
      %p78 = por %p76, %p77
      %p79 = scmp.ne.s32.totalorder %s65, %s66
      %p80 = scmp.eq.s32.totalorder %s32, 1
      %p81 = por %p79, %p80
      %p83 = scmp.ne.s32.totalorder %s66, %s82
      %p84 = scmp.eq.s32.totalorder %s32, 0
      %p85 = por %p83, %p84
      %s87 = sadd.s32 %s86, 1
      %p90 = scmp.eq.s32.totalorder %s26, 1
      %p91 = scmp.ne.s32.totalorder %s86, %s88
      %p92 = scmp.eq.s32.totalorder %s26, 0
      %p93 = por %p91, %p92
      %p94 = scmp.ne.s32.totalorder %s86, %s88
      %p95 = scmp.eq.s32.totalorder %s31, 1
      %p96 = por %p94, %p95
      %p97 = scmp.ne.s32.totalorder %s88, %s89
      %p98 = scmp.eq.s32.totalorder %s31, 0
      %p99 = por %p97, %p98
      %p100 = scmp.ne.s32.totalorder %s88, %s89
      %p101 = scmp.eq.s32.totalorder %s32, 1
      %p102 = por %p100, %p101
      %p104 = scmp.ne.s32.totalorder %s89, %s103
      %p105 = scmp.eq.s32.totalorder %s32, 0
      %p106 = por %p104, %p105
      %s108 = sadd.s32 %s107, 1
      %p111 = scmp.eq.s32.totalorder %s26, 1
      %p112 = scmp.ne.s32.totalorder %s107, %s109
      %p113 = scmp.eq.s32.totalorder %s26, 0
      %p114 = por %p112, %p113
      %p115 = scmp.ne.s32.totalorder %s107, %s109
      %p116 = scmp.eq.s32.totalorder %s31, 1
      %p117 = por %p115, %p116
      %p118 = scmp.ne.s32.totalorder %s109, %s110
      %p119 = scmp.eq.s32.totalorder %s31, 0
      %p120 = por %p118, %p119
      %p121 = scmp.ne.s32.totalorder %s109, %s110
      %p122 = scmp.eq.s32.totalorder %s32, 1
      %p123 = por %p121, %p122
      %p125 = scmp.ne.s32.totalorder %s110, %s124
      %p126 = scmp.eq.s32.totalorder %s32, 0
      %p127 = por %p125, %p126
      %s129 = sadd.s32 %s128, 1
      %p132 = scmp.eq.s32.totalorder %s26, 1
      %p133 = scmp.ne.s32.totalorder %s128, %s130
      %p134 = scmp.eq.s32.totalorder %s26, 0
      %p135 = por %p133, %p134
      %p136 = scmp.ne.s32.totalorder %s128, %s130
      %p137 = scmp.eq.s32.totalorder %s31, 1
      %p138 = por %p136, %p137
      %p139 = scmp.ne.s32.totalorder %s130, %s131
      %p140 = scmp.eq.s32.totalorder %s31, 0
      %p141 = por %p139, %p140
      %p142 = scmp.ne.s32.totalorder %s130, %s131
      %p143 = scmp.eq.s32.totalorder %s32, 1
      %p144 = por %p142, %p143
      %p146 = scmp.ne.s32.totalorder %s131, %s145
      %p147 = scmp.eq.s32.totalorder %s32, 0
      %p148 = por %p146, %p147
      %s150 = sadd.s32 %s149, 1
      %p153 = scmp.eq.s32.totalorder %s26, 1
      %p154 = scmp.ne.s32.totalorder %s149, %s151
      %p155 = scmp.eq.s32.totalorder %s26, 0
      %p156 = por %p154, %p155
      %p157 = scmp.ne.s32.totalorder %s149, %s151
      %p158 = scmp.eq.s32.totalorder %s31, 1
      %p159 = por %p157, %p158
      %p160 = scmp.ne.s32.totalorder %s151, %s152
      %p161 = scmp.eq.s32.totalorder %s31, 0
      %p162 = por %p160, %p161
      %p163 = scmp.ne.s32.totalorder %s151, %s152
      %p164 = scmp.eq.s32.totalorder %s32, 1
      %p165 = por %p163, %p164
      %p167 = scmp.ne.s32.totalorder %s152, %s166
      %p168 = scmp.eq.s32.totalorder %s32, 0
      %p169 = por %p167, %p168
      %s171 = sadd.s32 %s170, 1
      %p174 = scmp.eq.s32.totalorder %s26, 1
      %p175 = scmp.ne.s32.totalorder %s170, %s172
      %p176 = scmp.eq.s32.totalorder %s26, 0
      %p177 = por %p175, %p176
      %p178 = scmp.ne.s32.totalorder %s170, %s172
      %p179 = scmp.eq.s32.totalorder %s31, 1
      %p180 = por %p178, %p179
      %p181 = scmp.ne.s32.totalorder %s172, %s173
      %p182 = scmp.eq.s32.totalorder %s31, 0
      %p183 = por %p181, %p182
      %p184 = scmp.ne.s32.totalorder %s172, %s173
      %p185 = scmp.eq.s32.totalorder %s32, 1
      %p186 = por %p184, %p185
      %p188 = scmp.ne.s32.totalorder %s173, %s187
      %p189 = scmp.eq.s32.totalorder %s32, 0
      %p190 = por %p188, %p189
      %s192 = sadd.s32 %s191, 1
      %p195 = scmp.eq.s32.totalorder %s26, 1
      %p196 = scmp.ne.s32.totalorder %s191, %s193
      %p197 = scmp.eq.s32.totalorder %s26, 0
      %p198 = por %p196, %p197
      %p199 = scmp.ne.s32.totalorder %s191, %s193
      %p200 = scmp.eq.s32.totalorder %s31, 1
      %p201 = por %p199, %p200
      %p202 = scmp.ne.s32.totalorder %s193, %s194
      %p203 = scmp.eq.s32.totalorder %s31, 0
      %p204 = por %p202, %p203
      %p205 = scmp.ne.s32.totalorder %s193, %s194
      %p206 = scmp.eq.s32.totalorder %s32, 1
      %p207 = por %p205, %p206
      %p209 = scmp.ne.s32.totalorder %s194, %s208
      %p210 = scmp.eq.s32.totalorder %s32, 0
      %p211 = por %p209, %p210
      %s213 = sadd.s32 %s212, 1
      %p216 = scmp.eq.s32.totalorder %s26, 1
      %p217 = scmp.ne.s32.totalorder %s212, %s214
      %p218 = scmp.eq.s32.totalorder %s26, 0
      %p219 = por %p217, %p218
      %p220 = scmp.ne.s32.totalorder %s212, %s214
      %p221 = scmp.eq.s32.totalorder %s31, 1
      %p222 = por %p220, %p221
      %p223 = scmp.ne.s32.totalorder %s214, %s215
      %p224 = scmp.eq.s32.totalorder %s31, 0
      %p225 = por %p223, %p224
      %p226 = scmp.ne.s32.totalorder %s214, %s215
      %p227 = scmp.eq.s32.totalorder %s32, 1
      %p228 = por %p226, %p227
      %p230 = scmp.ne.s32.totalorder %s215, %s229
      %p231 = scmp.eq.s32.totalorder %s32, 0
      %p232 = por %p230, %p231
      %s234 = sadd.s32 %s233, 1
      %p237 = scmp.eq.s32.totalorder %s26, 1
      %p238 = scmp.ne.s32.totalorder %s233, %s235
      %p239 = scmp.eq.s32.totalorder %s26, 0
      %p240 = por %p238, %p239
      %p241 = scmp.ne.s32.totalorder %s233, %s235
      %p242 = scmp.eq.s32.totalorder %s31, 1
      %p243 = por %p241, %p242
      %p244 = scmp.ne.s32.totalorder %s235, %s236
      %p245 = scmp.eq.s32.totalorder %s31, 0
      %p246 = por %p244, %p245
      %p247 = scmp.ne.s32.totalorder %s235, %s236
      %p248 = scmp.eq.s32.totalorder %s32, 1
      %p249 = por %p247, %p248
      %p251 = scmp.ne.s32.totalorder %s236, %s250
      %p252 = scmp.eq.s32.totalorder %s32, 0
      %p253 = por %p251, %p252
      %s255 = sadd.s32 %s254, 1
      %p258 = scmp.eq.s32.totalorder %s26, 1
      %p259 = scmp.ne.s32.totalorder %s254, %s256
      %p260 = scmp.eq.s32.totalorder %s26, 0
      %p261 = por %p259, %p260
      %p262 = scmp.ne.s32.totalorder %s254, %s256
      %p263 = scmp.eq.s32.totalorder %s31, 1
      %p264 = por %p262, %p263
      %p265 = scmp.ne.s32.totalorder %s256, %s257
      %p266 = scmp.eq.s32.totalorder %s31, 0
      %p267 = por %p265, %p266
      %p268 = scmp.ne.s32.totalorder %s256, %s257
      %p269 = scmp.eq.s32.totalorder %s32, 1
      %p270 = por %p268, %p269
      %p272 = scmp.ne.s32.totalorder %s257, %s271
      %p273 = scmp.eq.s32.totalorder %s32, 0
      %p274 = por %p272, %p273
      %s275 = ssub.s32 %s26, %s33
      %p276 = scmp.eq.s32.totalorder %s275, 0
      %s278 = sadd.s32 %s277, 1
      %s279 = scalar_select %p276, %s277, %s278
      %p282 = pneg %p276
      %p283 = scmp.eq.s32.totalorder %s26, 1
      %p284 = por %p282, %p283
      %p285 = scmp.ne.s32.totalorder %s277, %s280
      %p286 = scmp.eq.s32.totalorder %s26, 0
      %p287 = por %p285, %p286
      %p288 = scmp.ne.s32.totalorder %s277, %s280
      %p289 = scmp.eq.s32.totalorder %s31, 1
      %p290 = por %p288, %p289
      %p291 = scmp.ne.s32.totalorder %s280, %s281
      %p292 = scmp.eq.s32.totalorder %s31, 0
      %p293 = por %p291, %p292
      %p294 = scmp.ne.s32.totalorder %s280, %s281
      %p295 = scmp.eq.s32.totalorder %s32, 1
      %p296 = por %p294, %p295
      %p298 = scmp.ne.s32.totalorder %s281, %s297
      %p299 = scmp.eq.s32.totalorder %s32, 0
      %p300 = por %p298, %p299
      %p301 = scmp.le.s32.totalorder 1, %s26
      %p302 = scmp.lt.s32.totalorder %s26, 3
      %p303 = pnand %p301, %p302
      %p304 = pneg %p303
      // Predicated region
      $region9: #{tpu_custom_call.1} parent=5 // pred_check
        _
      $region10: #{tpu_custom_call.1} parent=5 // pred_check_branch
        %306 = sbr.rel (%p303) target = $region12
      $region11: #{tpu_custom_call.1} parent=5 // pred_region
        %s307 = ssub.s32 %s26, 1
        // Predicated region
        $region13: #{tpu_custom_call.1} parent=11 // pred_check
          %p308 = pneg %p99
        $region14: #{tpu_custom_call.1} parent=11 // pred_check_branch
          %310 = sbr.rel (%p308) target = $region16
        $region15: #{tpu_custom_call.1} parent=11 // pred_region
          _
        $region16: #{tpu_custom_call.1} parent=11 // pred_fallthru
          _
        // Predicated region
        $region17: #{tpu_custom_call.1} parent=11 // pred_check
          %p311 = pneg %p120
        $region18: #{tpu_custom_call.1} parent=11 // pred_check_branch
          %313 = sbr.rel (%p311) target = $region20
        $region19: #{tpu_custom_call.1} parent=11 // pred_region
          _
        $region20: #{tpu_custom_call.1} parent=11 // pred_fallthru
          _
        // Predicated region
        $region21: #{tpu_custom_call.1} parent=11 // pred_check
          %p314 = pneg %p141
        $region22: #{tpu_custom_call.1} parent=11 // pred_check_branch
          %316 = sbr.rel (%p314) target = $region24
        $region23: #{tpu_custom_call.1} parent=11 // pred_region
          %318 = vsyncadd [#allocation5], 0
          %s320 = sshll.u32 %s4, 4
          %s321 = int_to_ptr.vmem [resolvable:$true] %s320
          %323 = dma.vmem_to_smem %s321, 16, [#allocation6], [#allocation5]
        $region24: #{tpu_custom_call.1} parent=11 // pred_fallthru
          _
        // Predicated region
        $region25: #{tpu_custom_call.1} parent=11 // pred_check
          %p324 = pneg %p162
        $region26: #{tpu_custom_call.1} parent=11 // pred_check_branch
          %326 = sbr.rel (%p324) target = $region28
        $region27: #{tpu_custom_call.1} parent=11 // pred_region
          %328 = vsyncadd [#allocation8], 0
          %s329 = sshll.u32 %s5, 4
          %s330 = int_to_ptr.hbm [resolvable:$true] %s329
          %s331 = sshll.u32 [#allocation7], 4
          %s332 = int_to_ptr.vmem [resolvable:$true] %s331
          %337 = dma.hbm_to_vmem [thread:$0]  %s330, 1024, %s332, [#allocation8], 128, 128, 8
        $region28: #{tpu_custom_call.1} parent=11 // pred_fallthru
          _
        // Predicated region
        $region29: #{tpu_custom_call.1} parent=11 // pred_check
          %p338 = pneg %p183
        $region30: #{tpu_custom_call.1} parent=11 // pred_check_branch
          %340 = sbr.rel (%p338) target = $region32
        $region31: #{tpu_custom_call.1} parent=11 // pred_region
          _
        $region32: #{tpu_custom_call.1} parent=11 // pred_fallthru
          _
        // Predicated region
        $region33: #{tpu_custom_call.1} parent=11 // pred_check
          %p341 = pneg %p204
        $region34: #{tpu_custom_call.1} parent=11 // pred_check_branch
          %343 = sbr.rel (%p341) target = $region36
        $region35: #{tpu_custom_call.1} parent=11 // pred_region
          %345 = vsyncadd [#allocation8], 0
          %s346 = sshll.u32 %s7, 4
          %s347 = int_to_ptr.hbm [resolvable:$true] %s346
          %s348 = sshll.u32 [#allocation9], 4
          %s349 = int_to_ptr.vmem [resolvable:$true] %s348
          %354 = dma.hbm_to_vmem [thread:$0]  %s347, 1024, %s349, [#allocation8], 128, 128, 8
        $region36: #{tpu_custom_call.1} parent=11 // pred_fallthru
          _
        // Predicated region
        $region37: #{tpu_custom_call.1} parent=11 // pred_check
          %p355 = pneg %p225
        $region38: #{tpu_custom_call.1} parent=11 // pred_check_branch
          %357 = sbr.rel (%p355) target = $region40
        $region39: #{tpu_custom_call.1} parent=11 // pred_region
          _
        $region40: #{tpu_custom_call.1} parent=11 // pred_fallthru
          _
        // Predicated region
        $region41: #{tpu_custom_call.1} parent=11 // pred_check
          %p358 = pneg %p246
        $region42: #{tpu_custom_call.1} parent=11 // pred_check_branch
          %360 = sbr.rel (%p358) target = $region44
        $region43: #{tpu_custom_call.1} parent=11 // pred_region
          %362 = vsyncadd [#allocation11], 0
          %s363 = sshll.u32 %s9, 4
          %s364 = int_to_ptr.hbm [resolvable:$true] %s363
          %s365 = sshll.u32 [#allocation10], 4
          %s366 = int_to_ptr.vmem [resolvable:$true] %s365
          %371 = dma.hbm_to_vmem [thread:$0]  %s364, 1024, %s366, [#allocation11], 128, 128, 8
        $region44: #{tpu_custom_call.1} parent=11 // pred_fallthru
          _
        // Predicated region
        $region45: #{tpu_custom_call.1} parent=11 // pred_check
          %p372 = pneg %p267
        $region46: #{tpu_custom_call.1} parent=11 // pred_check_branch
          %374 = sbr.rel (%p372) target = $region48
        $region47: #{tpu_custom_call.1} parent=11 // pred_region
          _
        $region48: #{tpu_custom_call.1} parent=11 // pred_fallthru
          _
      $region12: #{tpu_custom_call.1} parent=5 // pred_fallthru
        _
      %p375 = scmp.lt.s32.totalorder %s26, 2
      // Predicated region
      $region49: #{tpu_custom_call.1} parent=5 // pred_check
        %p376 = pneg %p375
      $region50: #{tpu_custom_call.1} parent=5 // pred_check_branch
        %378 = sbr.rel (%p376) target = $region52
      $region51: #{tpu_custom_call.1} parent=5 // pred_region
        // Predicated region
        $region53: #{tpu_custom_call.1} parent=51 // pred_check
          %p379 = pneg %p46
        $region54: #{tpu_custom_call.1} parent=51 // pred_check_branch
          %381 = sbr.rel (%p379) target = $region56
        $region55: #{tpu_custom_call.1} parent=51 // pred_region
          %s382 = sand.u32 %s36, 1
          %s383 = scalar_lea.sflag [#allocation3], %s382
          %s384 = sand.u32 %s36, 1
          %s385 = smul.addr %s384, 64
          %s386 = scalar_lea.vmem [#allocation2], %s385
          %s387 = smul.u32 8, %s26
          %389 = vsyncadd %s383, 0
          %s390 = smul.addr %s387, 8
          %s391 = scalar_lea.hbm %s0, %s390
          %s392 = sshll.u32 %s391, 4
          %s393 = int_to_ptr.hbm [resolvable:$true] %s392
          %s394 = sshll.u32 %s386, 4
          %s395 = int_to_ptr.vmem [resolvable:$true] %s394
          %400 = dma.hbm_to_vmem [thread:$0]  %s393, 1024, %s395, %s383, 128, 128, 8
        $region56: #{tpu_custom_call.1} parent=51 // pred_fallthru
          _
        // Predicated region
        $region57: #{tpu_custom_call.1} parent=51 // pred_check
          %p401 = pneg %p72
        $region58: #{tpu_custom_call.1} parent=51 // pred_check_branch
          %403 = sbr.rel (%p401) target = $region60
        $region59: #{tpu_custom_call.1} parent=51 // pred_region
          %p404 = scmp.lt.s32.totalorder %s26, 1
          %s405 = scalar_select %p404, %s26, 1
          %s406 = smul.addr %s405, 8
          %s407 = scalar_lea.vmem %s1, %s406
        $region60: #{tpu_custom_call.1} parent=51 // pred_fallthru
          _
      $region52: #{tpu_custom_call.1} parent=5 // pred_fallthru
        _
      %p408 = scmp.le.s32.totalorder 1, %s26
      %p409 = scmp.lt.s32.totalorder %s26, 3
      %p410 = pnand %p408, %p409
      %p411 = pneg %p410
      // Predicated region
      $region61: #{tpu_custom_call.1} parent=5 // pred_check
        _
      $region62: #{tpu_custom_call.1} parent=5 // pred_check_branch
        %413 = sbr.rel (%p410) target = $region64
      $region63: #{tpu_custom_call.1} parent=5 // pred_region
        %s414 = ssub.s32 %s26, 1
        %s415 = sand.u32 %s39, 1
        %s416 = scalar_lea.sflag [#allocation3], %s415
        %s417 = sand.u32 %s39, 1
        %s418 = smul.addr %s417, 64
        %s419 = scalar_lea.vmem [#allocation2], %s418
        // Predicated region
        $region65: #{tpu_custom_call.1} parent=63 // pred_check
          %p420 = pneg %p52
        $region66: #{tpu_custom_call.1} parent=63 // pred_check_branch
          %422 = sbr.rel (%p420) target = $region68
        $region67: #{tpu_custom_call.1} parent=63 // pred_region
          %424 = dma.done %s416, 1024
        $region68: #{tpu_custom_call.1} parent=63 // pred_fallthru
          _
        // Predicated region
        $region69: #{tpu_custom_call.1} parent=63 // pred_check
          %p425 = pneg %p141
        $region70: #{tpu_custom_call.1} parent=63 // pred_check_branch
          %427 = sbr.rel (%p425) target = $region72
        $region71: #{tpu_custom_call.1} parent=63 // pred_region
          %429 = dma.done [#allocation5], 16
        $region72: #{tpu_custom_call.1} parent=63 // pred_fallthru
          _
        // Predicated region
        $region73: #{tpu_custom_call.1} parent=63 // pred_check
          %p430 = pneg %p162
        $region74: #{tpu_custom_call.1} parent=63 // pred_check_branch
          %432 = sbr.rel (%p430) target = $region76
        $region75: #{tpu_custom_call.1} parent=63 // pred_region
          %434 = dma.done [#allocation8], 1024
        $region76: #{tpu_custom_call.1} parent=63 // pred_fallthru
          _
        // Predicated region
        $region77: #{tpu_custom_call.1} parent=63 // pred_check
          %p435 = pneg %p204
        $region78: #{tpu_custom_call.1} parent=63 // pred_check_branch
          %437 = sbr.rel (%p435) target = $region80
        $region79: #{tpu_custom_call.1} parent=63 // pred_region
          %439 = dma.done [#allocation8], 1024
        $region80: #{tpu_custom_call.1} parent=63 // pred_fallthru
          _
        // Predicated region
        $region81: #{tpu_custom_call.1} parent=63 // pred_check
          %p440 = pneg %p246
        $region82: #{tpu_custom_call.1} parent=63 // pred_check_branch
          %442 = sbr.rel (%p440) target = $region84
        $region83: #{tpu_custom_call.1} parent=63 // pred_region
          %444 = dma.done [#allocation11], 1024
        $region84: #{tpu_custom_call.1} parent=63 // pred_fallthru
          _
        %445 = sfence
        %s446 = sand.u32 %s39, 1
        %s447 = scalar_lea.sflag [#allocation3], %s446
        %s448 = sand.u32 %s39, 1
        %s449 = smul.addr %s448, 64
        %s450 = scalar_lea.vmem [#allocation2], %s449
        %p451 = pneg %p52
        %p452 = pneg %p49
        %p453 = scmp.lt.s32.totalorder %s31, 1
        %s454 = scalar_select %p453, %s31, 1
        %s455 = smul.addr %s454, 8
        %s456 = scalar_lea.vmem %s1, %s455
        %p457 = pneg %p78
        %p458 = pneg %p75
        %p459 = pneg %p99
        %p460 = pneg %p96
        %p461 = pneg %p120
        %p462 = pneg %p117
        %p463 = pneg %p141
        %p464 = pneg %p138
        %p465 = pneg %p162
        %p466 = pneg %p159
        %p467 = pneg %p183
        %p468 = pneg %p180
        %p469 = pneg %p204
        %p470 = pneg %p201
        %p471 = pneg %p225
        %p472 = pneg %p222
        %p473 = pneg %p246
        %p474 = pneg %p243
        %p475 = pneg %p267
        %p476 = pneg %p264
        %p477 = pneg %p293
        %p478 = pneg %p290
        %s479 = sand.u32 %s280, 1
        %s480 = scalar_lea.sflag [#allocation4], %s479
        %s481 = sand.u32 %s280, 1
        %s482 = smul.addr %s481, 8
        %s483 = scalar_lea.vmem [#allocation12], %s482
        %s484 = smul.u32 8, %s31
        %p485 = scmp.lt.s32.totalorder %s31, 1
        %s486 = scalar_select %p485, %s31, 1
        %s487 = smul.addr %s486, 8
        %s488 = scalar_lea.vmem %s1, %s487
        %v489 = vld [vmem:[%s419] sm:$0xff]
        %v490 = vld [vmem:[%s419 + $0x8] sm:$0xff]
        %v491 = vld [vmem:[%s419 + $0x10] sm:$0xff]
        %v492 = vld [vmem:[%s419 + $0x18] sm:$0xff]
        %v493 = vld [vmem:[%s419 + $0x20] sm:$0xff]
        %v494 = vld [vmem:[%s419 + $0x28] sm:$0xff]
        %v495 = vld [vmem:[%s419 + $0x30] sm:$0xff]
        %v496 = vld [vmem:[%s419 + $0x38] sm:$0xff]
        %v497 = vld [vmem:[%s488] sm:$0xff]
        %v498 = vperm.slane %v497, 0
        %v499 = vlaneseq
        %v500 = vshrl.u32 %v499, 7
        %502 = vset.pattern.permute.xlu0 %v500
        %503 = vperm.xlu0 %502, %v498
        %v504 = vpop.permute.xlu0 %503
        %v505 = vperm.slane %v497, 1
        %v506 = vlaneseq
        %v507 = vshrl.u32 %v506, 7
        %509 = vset.pattern.permute.xlu0 %v507
        %510 = vperm.xlu0 %509, %v505
        %v511 = vpop.permute.xlu0 %510
        %v512 = vperm.slane %v497, 2
        %v513 = vlaneseq
        %v514 = vshrl.u32 %v513, 7
        %516 = vset.pattern.permute.xlu0 %v514
        %517 = vperm.xlu0 %516, %v512
        %v518 = vpop.permute.xlu0 %517
        %v519 = vperm.slane %v497, 3
        %v520 = vlaneseq
        %v521 = vshrl.u32 %v520, 7
        %523 = vset.pattern.permute.xlu0 %v521
        %524 = vperm.xlu0 %523, %v519
        %v525 = vpop.permute.xlu0 %524
        %v526 = vperm.slane %v497, 4
        %v527 = vlaneseq
        %v528 = vshrl.u32 %v527, 7
        %530 = vset.pattern.permute.xlu0 %v528
        %531 = vperm.xlu0 %530, %v526
        %v532 = vpop.permute.xlu0 %531
        %v533 = vperm.slane %v497, 5
        %v534 = vlaneseq
        %v535 = vshrl.u32 %v534, 7
        %537 = vset.pattern.permute.xlu0 %v535
        %538 = vperm.xlu0 %537, %v533
        %v539 = vpop.permute.xlu0 %538
        %v540 = vperm.slane %v497, 6
        %v541 = vlaneseq
        %v542 = vshrl.u32 %v541, 7
        %544 = vset.pattern.permute.xlu0 %v542
        %545 = vperm.xlu0 %544, %v540
        %v546 = vpop.permute.xlu0 %545
        %v547 = vperm.slane %v497, 7
        %v548 = vlaneseq
        %v549 = vshrl.u32 %v548, 7
        %551 = vset.pattern.permute.xlu0 %v549
        %552 = vperm.xlu0 %551, %v547
        %v553 = vpop.permute.xlu0 %552
        %v554 = vmul.f32 %v489, %v504
        %v555 = vmul.f32 %v490, %v511
        %v556 = vmul.f32 %v491, %v518
        %v557 = vmul.f32 %v492, %v525
        %v558 = vmul.f32 %v493, %v532
        %v559 = vmul.f32 %v494, %v539
        %v560 = vmul.f32 %v495, %v546
        %v561 = vmul.f32 %v496, %v553
        %vm562 = vcmask 261120
        %v563 = vsel %vm562, %v554, 0.0
        %v564 = vrot.slane %v563, 4
        %v565 = vadd.f32 %v563, %v564
        %v566 = vrot.slane %v565, 2
        %v567 = vadd.f32 %v565, %v566
        %v568 = vrot.slane %v567, 1
        %v569 = vadd.f32 %v567, %v568
        %v570 = vsel %vm562, %v555, 0.0
        %v571 = vrot.slane %v570, 4
        %v572 = vadd.f32 %v570, %v571
        %v573 = vrot.slane %v572, 2
        %v574 = vadd.f32 %v572, %v573
        %v575 = vrot.slane %v574, 1
        %v576 = vadd.f32 %v574, %v575
        %v577 = vsel %vm562, %v556, 0.0
        %v578 = vrot.slane %v577, 4
        %v579 = vadd.f32 %v577, %v578
        %v580 = vrot.slane %v579, 2
        %v581 = vadd.f32 %v579, %v580
        %v582 = vrot.slane %v581, 1
        %v583 = vadd.f32 %v581, %v582
        %v584 = vsel %vm562, %v557, 0.0
        %v585 = vrot.slane %v584, 4
        %v586 = vadd.f32 %v584, %v585
        %v587 = vrot.slane %v586, 2
        %v588 = vadd.f32 %v586, %v587
        %v589 = vrot.slane %v588, 1
        %v590 = vadd.f32 %v588, %v589
        %v591 = vsel %vm562, %v558, 0.0
        %v592 = vrot.slane %v591, 4
        %v593 = vadd.f32 %v591, %v592
        %v594 = vrot.slane %v593, 2
        %v595 = vadd.f32 %v593, %v594
        %v596 = vrot.slane %v595, 1
        %v597 = vadd.f32 %v595, %v596
        %v598 = vsel %vm562, %v559, 0.0
        %v599 = vrot.slane %v598, 4
        %v600 = vadd.f32 %v598, %v599
        %v601 = vrot.slane %v600, 2
        %v602 = vadd.f32 %v600, %v601
        %v603 = vrot.slane %v602, 1
        %v604 = vadd.f32 %v602, %v603
        %v605 = vsel %vm562, %v560, 0.0
        %v606 = vrot.slane %v605, 4
        %v607 = vadd.f32 %v605, %v606
        %v608 = vrot.slane %v607, 2
        %v609 = vadd.f32 %v607, %v608
        %v610 = vrot.slane %v609, 1
        %v611 = vadd.f32 %v609, %v610
        %v612 = vsel %vm562, %v561, 0.0
        %v613 = vrot.slane %v612, 4
        %v614 = vadd.f32 %v612, %v613
        %v615 = vrot.slane %v614, 2
        %v616 = vadd.f32 %v614, %v615
        %v617 = vrot.slane %v616, 1
        %v618 = vadd.f32 %v616, %v617
        %v619 = vmax.f32 %v569, 0.0
        %v620 = vmax.f32 %v576, 0.0
        %v621 = vmax.f32 %v583, 0.0
        %v622 = vmax.f32 %v590, 0.0
        %v623 = vmax.f32 %v597, 0.0
        %v624 = vmax.f32 %v604, 0.0
        %v625 = vmax.f32 %v611, 0.0
        %v626 = vmax.f32 %v618, 0.0
        %v627 = vld [vmem:[%s2] sm:$0x1]
        %v629 = vperm.slane %v627, 0
        %v631 = vmul.f32 %v619, %v629
        %v632 = vmul.f32 %v620, %v629
        %v633 = vmul.f32 %v621, %v629
        %v634 = vmul.f32 %v622, %v629
        %v635 = vmul.f32 %v623, %v629
        %v636 = vmul.f32 %v624, %v629
        %v637 = vmul.f32 %v625, %v629
        %v638 = vmul.f32 %v626, %v629
        %v647 = vrot.slane %v632, 7
        %vm648 = vcmask 1041409
        %v649 = vsel %vm648, %v647, %v631
        %v650 = vrot.slane %v633, 6
        %vm651 = vcmask 1042434
        %v652 = vsel %vm651, %v650, %v649
        %v653 = vrot.slane %v634, 5
        %vm654 = vcmask 1043459
        %v655 = vsel %vm654, %v653, %v652
        %v656 = vrot.slane %v635, 4
        %vm657 = vcmask 1044484
        %v658 = vsel %vm657, %v656, %v655
        %v659 = vrot.slane %v636, 3
        %vm660 = vcmask 1045509
        %v661 = vsel %vm660, %v659, %v658
        %v662 = vrot.slane %v637, 2
        %vm663 = vcmask 1046534
        %v664 = vsel %vm663, %v662, %v661
        %v665 = vrot.slane %v638, 1
        %vm666 = vcmask 1047559
        %v667 = vsel %vm666, %v665, %v664
        %v669 = vsel %vm562, %v667, 0.0
        %670 = vadd.xlane.f32.xlu0 %v669
        %v671 = vpop.xlane.xlu0 %670
        %v672 = vld [vmem:[%s3] sm:$0x1]
        %v674 = vperm.slane %v672, 0
        %v676 = vmul.f32 %v489, %v674
        %v677 = vmul.f32 %v490, %v674
        %v678 = vmul.f32 %v491, %v674
        %v679 = vmul.f32 %v492, %v674
        %v680 = vmul.f32 %v493, %v674
        %v681 = vmul.f32 %v494, %v674
        %v682 = vmul.f32 %v495, %v674
        %v683 = vmul.f32 %v496, %v674
        %v684 = vsel %vm562, %v676, 0.0
        %685 = vadd.xlane.f32.xlu0 %v684
        %v686 = vpop.xlane.xlu0 %685
        %v687 = vsel %vm562, %v677, 0.0
        %688 = vadd.xlane.f32.xlu0 %v687
        %v689 = vpop.xlane.xlu0 %688
        %v690 = vsel %vm562, %v678, 0.0
        %691 = vadd.xlane.f32.xlu0 %v690
        %v692 = vpop.xlane.xlu0 %691
        %v693 = vsel %vm562, %v679, 0.0
        %694 = vadd.xlane.f32.xlu0 %v693
        %v695 = vpop.xlane.xlu0 %694
        %v696 = vsel %vm562, %v680, 0.0
        %697 = vadd.xlane.f32.xlu0 %v696
        %v698 = vpop.xlane.xlu0 %697
        %v699 = vsel %vm562, %v681, 0.0
        %700 = vadd.xlane.f32.xlu0 %v699
        %v701 = vpop.xlane.xlu0 %700
        %v702 = vsel %vm562, %v682, 0.0
        %703 = vadd.xlane.f32.xlu0 %v702
        %v704 = vpop.xlane.xlu0 %703
        %v705 = vsel %vm562, %v683, 0.0
        %706 = vadd.xlane.f32.xlu0 %v705
        %v707 = vpop.xlane.xlu0 %706
        %v709 = vperm.slane %v671, 0
        %v710 = vperm.slane %v671, 1
        %v711 = vperm.slane %v671, 2
        %v712 = vperm.slane %v671, 3
        %v713 = vperm.slane %v671, 4
        %v714 = vperm.slane %v671, 5
        %v715 = vperm.slane %v671, 6
        %v716 = vperm.slane %v671, 7
        %v725 = vadd.f32 %v686, %v709
        %v726 = vadd.f32 %v689, %v710
        %v727 = vadd.f32 %v692, %v711
        %v728 = vadd.f32 %v695, %v712
        %v729 = vadd.f32 %v698, %v713
        %v730 = vadd.f32 %v701, %v714
        %v731 = vadd.f32 %v704, %v715
        %v732 = vadd.f32 %v707, %v716
        %s733 = sld [smem:[#allocation6]]
        %v734 = vstv %s733
        %v735 = vadd.f32 %v725, %v734
        %v736 = vadd.f32 %v726, %v734
        %v737 = vadd.f32 %v727, %v734
        %v738 = vadd.f32 %v728, %v734
        %v739 = vadd.f32 %v729, %v734
        %v740 = vadd.f32 %v730, %v734
        %v741 = vadd.f32 %v731, %v734
        %v742 = vadd.f32 %v732, %v734
        %vm743 = vcmp.ge.f32.partialorder %v735, 0.0
        %vm744 = vcmp.ge.f32.partialorder %v736, 0.0
        %vm745 = vcmp.ge.f32.partialorder %v737, 0.0
        %vm746 = vcmp.ge.f32.partialorder %v738, 0.0
        %vm747 = vcmp.ge.f32.partialorder %v739, 0.0
        %vm748 = vcmp.ge.f32.partialorder %v740, 0.0
        %vm749 = vcmp.ge.f32.partialorder %v741, 0.0
        %vm750 = vcmp.ge.f32.partialorder %v742, 0.0
        %v751 = vmul.f32 %v735, 0.01
        %v752 = vmul.f32 %v736, 0.01
        %v753 = vmul.f32 %v737, 0.01
        %v754 = vmul.f32 %v738, 0.01
        %v755 = vmul.f32 %v739, 0.01
        %v756 = vmul.f32 %v740, 0.01
        %v757 = vmul.f32 %v741, 0.01
        %v758 = vmul.f32 %v742, 0.01
        %v759 = vsel %vm743, %v735, %v751
        %v760 = vsel %vm744, %v736, %v752
        %v761 = vsel %vm745, %v737, %v753
        %v762 = vsel %vm746, %v738, %v754
        %v763 = vsel %vm747, %v739, %v755
        %v764 = vsel %vm748, %v740, %v756
        %v765 = vsel %vm749, %v741, %v757
        %v766 = vsel %vm750, %v742, %v758
        %vm767 = vcmp.gt.f32.partialorder %v504, 0.0
        %vm768 = vcmp.gt.f32.partialorder %v511, 0.0
        %vm769 = vcmp.gt.f32.partialorder %v518, 0.0
        %vm770 = vcmp.gt.f32.partialorder %v525, 0.0
        %vm771 = vcmp.gt.f32.partialorder %v532, 0.0
        %vm772 = vcmp.gt.f32.partialorder %v539, 0.0
        %vm773 = vcmp.gt.f32.partialorder %v546, 0.0
        %vm774 = vcmp.gt.f32.partialorder %v553, 0.0
        %v775 = vsel %vm767, %v759, -1e+30
        %v776 = vsel %vm768, %v760, -1e+30
        %v777 = vsel %vm769, %v761, -1e+30
        %v778 = vsel %vm770, %v762, -1e+30
        %v779 = vsel %vm771, %v763, -1e+30
        %v780 = vsel %vm772, %v764, -1e+30
        %v781 = vsel %vm773, %v765, -1e+30
        %v782 = vsel %vm774, %v766, -1e+30
        %v783 = vrot.slane %v775, 4
        %v784 = vmax.f32 %v775, %v783
        %v785 = vrot.slane %v784, 2
        %v786 = vmax.f32 %v784, %v785
        %v787 = vrot.slane %v786, 1
        %v788 = vmax.f32 %v786, %v787
        %v789 = vrot.slane %v776, 4
        %v790 = vmax.f32 %v776, %v789
        %v791 = vrot.slane %v790, 2
        %v792 = vmax.f32 %v790, %v791
        %v793 = vrot.slane %v792, 1
        %v794 = vmax.f32 %v792, %v793
        %v795 = vrot.slane %v777, 4
        %v796 = vmax.f32 %v777, %v795
        %v797 = vrot.slane %v796, 2
        %v798 = vmax.f32 %v796, %v797
        %v799 = vrot.slane %v798, 1
        %v800 = vmax.f32 %v798, %v799
        %v801 = vrot.slane %v778, 4
        %v802 = vmax.f32 %v778, %v801
        %v803 = vrot.slane %v802, 2
        %v804 = vmax.f32 %v802, %v803
        %v805 = vrot.slane %v804, 1
        %v806 = vmax.f32 %v804, %v805
        %v807 = vrot.slane %v779, 4
        %v808 = vmax.f32 %v779, %v807
        %v809 = vrot.slane %v808, 2
        %v810 = vmax.f32 %v808, %v809
        %v811 = vrot.slane %v810, 1
        %v812 = vmax.f32 %v810, %v811
        %v813 = vrot.slane %v780, 4
        %v814 = vmax.f32 %v780, %v813
        %v815 = vrot.slane %v814, 2
        %v816 = vmax.f32 %v814, %v815
        %v817 = vrot.slane %v816, 1
        %v818 = vmax.f32 %v816, %v817
        %v819 = vrot.slane %v781, 4
        %v820 = vmax.f32 %v781, %v819
        %v821 = vrot.slane %v820, 2
        %v822 = vmax.f32 %v820, %v821
        %v823 = vrot.slane %v822, 1
        %v824 = vmax.f32 %v822, %v823
        %v825 = vrot.slane %v782, 4
        %v826 = vmax.f32 %v782, %v825
        %v827 = vrot.slane %v826, 2
        %v828 = vmax.f32 %v826, %v827
        %v829 = vrot.slane %v828, 1
        %v830 = vmax.f32 %v828, %v829
        %v831 = vsub.f32 %v775, %v788
        %v832 = vsub.f32 %v776, %v794
        %v833 = vsub.f32 %v777, %v800
        %v834 = vsub.f32 %v778, %v806
        %v835 = vsub.f32 %v779, %v812
        %v836 = vsub.f32 %v780, %v818
        %v837 = vsub.f32 %v781, %v824
        %v838 = vsub.f32 %v782, %v830
        %v839 = vmul.f32 %v831, 1.442695
        %v840 = vpow.pop %v839
        %v841 = vmul.f32 %v832, 1.442695
        %v842 = vpow.pop %v841
        %v843 = vmul.f32 %v833, 1.442695
        %v844 = vpow.pop %v843
        %v845 = vmul.f32 %v834, 1.442695
        %v846 = vpow.pop %v845
        %v847 = vmul.f32 %v835, 1.442695
        %v848 = vpow.pop %v847
        %v849 = vmul.f32 %v836, 1.442695
        %v850 = vpow.pop %v849
        %v851 = vmul.f32 %v837, 1.442695
        %v852 = vpow.pop %v851
        %v853 = vmul.f32 %v838, 1.442695
        %v854 = vpow.pop %v853
        %v855 = vmul.f32 %v840, %v504
        %v856 = vmul.f32 %v842, %v511
        %v857 = vmul.f32 %v844, %v518
        %v858 = vmul.f32 %v846, %v525
        %v859 = vmul.f32 %v848, %v532
        %v860 = vmul.f32 %v850, %v539
        %v861 = vmul.f32 %v852, %v546
        %v862 = vmul.f32 %v854, %v553
        %v863 = vrot.slane %v855, 4
        %v864 = vadd.f32 %v855, %v863
        %v865 = vrot.slane %v864, 2
        %v866 = vadd.f32 %v864, %v865
        %v867 = vrot.slane %v866, 1
        %v868 = vadd.f32 %v866, %v867
        %v869 = vrot.slane %v856, 4
        %v870 = vadd.f32 %v856, %v869
        %v871 = vrot.slane %v870, 2
        %v872 = vadd.f32 %v870, %v871
        %v873 = vrot.slane %v872, 1
        %v874 = vadd.f32 %v872, %v873
        %v875 = vrot.slane %v857, 4
        %v876 = vadd.f32 %v857, %v875
        %v877 = vrot.slane %v876, 2
        %v878 = vadd.f32 %v876, %v877
        %v879 = vrot.slane %v878, 1
        %v880 = vadd.f32 %v878, %v879
        %v881 = vrot.slane %v858, 4
        %v882 = vadd.f32 %v858, %v881
        %v883 = vrot.slane %v882, 2
        %v884 = vadd.f32 %v882, %v883
        %v885 = vrot.slane %v884, 1
        %v886 = vadd.f32 %v884, %v885
        %v887 = vrot.slane %v859, 4
        %v888 = vadd.f32 %v859, %v887
        %v889 = vrot.slane %v888, 2
        %v890 = vadd.f32 %v888, %v889
        %v891 = vrot.slane %v890, 1
        %v892 = vadd.f32 %v890, %v891
        %v893 = vrot.slane %v860, 4
        %v894 = vadd.f32 %v860, %v893
        %v895 = vrot.slane %v894, 2
        %v896 = vadd.f32 %v894, %v895
        %v897 = vrot.slane %v896, 1
        %v898 = vadd.f32 %v896, %v897
        %v899 = vrot.slane %v861, 4
        %v900 = vadd.f32 %v861, %v899
        %v901 = vrot.slane %v900, 2
        %v902 = vadd.f32 %v900, %v901
        %v903 = vrot.slane %v902, 1
        %v904 = vadd.f32 %v902, %v903
        %v905 = vrot.slane %v862, 4
        %v906 = vadd.f32 %v862, %v905
        %v907 = vrot.slane %v906, 2
        %v908 = vadd.f32 %v906, %v907
        %v909 = vrot.slane %v908, 1
        %v910 = vadd.f32 %v908, %v909
        %v911 = vmax.f32 %v868, 1e-30
        %v912 = vmax.f32 %v874, 1e-30
        %v913 = vmax.f32 %v880, 1e-30
        %v914 = vmax.f32 %v886, 1e-30
        %v915 = vmax.f32 %v892, 1e-30
        %v916 = vmax.f32 %v898, 1e-30
        %v917 = vmax.f32 %v904, 1e-30
        %v918 = vmax.f32 %v910, 1e-30
        %v919 = vrcp.pop %v911
        %v920 = vmul.f32 %v911, %v919
        %v921 = vsub.f32 1.0, %v920
        %v922 = vmul.f32 %v919, %v921
        %v923 = vadd.f32 %v919, %v922
        %vm924 = vweird.f32 %v911
        %vm925 = vweird.f32 %v919
        %vm926 = vmor %vm924, %vm925
        %v927 = vsel %vm926, %v919, %v923
        %v928 = vand.u32 2147483647, %v911
        %vm929 = vcmp.eq.f32.partialorder %v928, 8.507059e+37
        %v930 = vand.u32 %v911, 2147483648
        %v931 = vor.u32 1.1754944e-38, %v930
        %v932 = vsel %vm929, %v931, %v927
        %v933 = vmul.f32 %v855, %v932
        %v934 = vrcp.pop %v912
        %v935 = vmul.f32 %v912, %v934
        %v936 = vsub.f32 1.0, %v935
        %v937 = vmul.f32 %v934, %v936
        %v938 = vadd.f32 %v934, %v937
        %vm939 = vweird.f32 %v912
        %vm940 = vweird.f32 %v934
        %vm941 = vmor %vm939, %vm940
        %v942 = vsel %vm941, %v934, %v938
        %v943 = vand.u32 2147483647, %v912
        %vm944 = vcmp.eq.f32.partialorder %v943, 8.507059e+37
        %v945 = vand.u32 %v912, 2147483648
        %v946 = vor.u32 1.1754944e-38, %v945
        %v947 = vsel %vm944, %v946, %v942
        %v948 = vmul.f32 %v856, %v947
        %v949 = vrcp.pop %v913
        %v950 = vmul.f32 %v913, %v949
        %v951 = vsub.f32 1.0, %v950
        %v952 = vmul.f32 %v949, %v951
        %v953 = vadd.f32 %v949, %v952
        %vm954 = vweird.f32 %v913
        %vm955 = vweird.f32 %v949
        %vm956 = vmor %vm954, %vm955
        %v957 = vsel %vm956, %v949, %v953
        %v958 = vand.u32 2147483647, %v913
        %vm959 = vcmp.eq.f32.partialorder %v958, 8.507059e+37
        %v960 = vand.u32 %v913, 2147483648
        %v961 = vor.u32 1.1754944e-38, %v960
        %v962 = vsel %vm959, %v961, %v957
        %v963 = vmul.f32 %v857, %v962
        %v964 = vrcp.pop %v914
        %v965 = vmul.f32 %v914, %v964
        %v966 = vsub.f32 1.0, %v965
        %v967 = vmul.f32 %v964, %v966
        %v968 = vadd.f32 %v964, %v967
        %vm969 = vweird.f32 %v914
        %vm970 = vweird.f32 %v964
        %vm971 = vmor %vm969, %vm970
        %v972 = vsel %vm971, %v964, %v968
        %v973 = vand.u32 2147483647, %v914
        %vm974 = vcmp.eq.f32.partialorder %v973, 8.507059e+37
        %v975 = vand.u32 %v914, 2147483648
        %v976 = vor.u32 1.1754944e-38, %v975
        %v977 = vsel %vm974, %v976, %v972
        %v978 = vmul.f32 %v858, %v977
        %v979 = vrcp.pop %v915
        %v980 = vmul.f32 %v915, %v979
        %v981 = vsub.f32 1.0, %v980
        %v982 = vmul.f32 %v979, %v981
        %v983 = vadd.f32 %v979, %v982
        %vm984 = vweird.f32 %v915
        %vm985 = vweird.f32 %v979
        %vm986 = vmor %vm984, %vm985
        %v987 = vsel %vm986, %v979, %v983
        %v988 = vand.u32 2147483647, %v915
        %vm989 = vcmp.eq.f32.partialorder %v988, 8.507059e+37
        %v990 = vand.u32 %v915, 2147483648
        %v991 = vor.u32 1.1754944e-38, %v990
        %v992 = vsel %vm989, %v991, %v987
        %v993 = vmul.f32 %v859, %v992
        %v994 = vrcp.pop %v916
        %v995 = vmul.f32 %v916, %v994
        %v996 = vsub.f32 1.0, %v995
        %v997 = vmul.f32 %v994, %v996
        %v998 = vadd.f32 %v994, %v997
        %vm999 = vweird.f32 %v916
        %vm1000 = vweird.f32 %v994
        %vm1001 = vmor %vm999, %vm1000
        %v1002 = vsel %vm1001, %v994, %v998
        %v1003 = vand.u32 2147483647, %v916
        %vm1004 = vcmp.eq.f32.partialorder %v1003, 8.507059e+37
        %v1005 = vand.u32 %v916, 2147483648
        %v1006 = vor.u32 1.1754944e-38, %v1005
        %v1007 = vsel %vm1004, %v1006, %v1002
        %v1008 = vmul.f32 %v860, %v1007
        %v1009 = vrcp.pop %v917
        %v1010 = vmul.f32 %v917, %v1009
        %v1011 = vsub.f32 1.0, %v1010
        %v1012 = vmul.f32 %v1009, %v1011
        %v1013 = vadd.f32 %v1009, %v1012
        %vm1014 = vweird.f32 %v917
        %vm1015 = vweird.f32 %v1009
        %vm1016 = vmor %vm1014, %vm1015
        %v1017 = vsel %vm1016, %v1009, %v1013
        %v1018 = vand.u32 2147483647, %v917
        %vm1019 = vcmp.eq.f32.partialorder %v1018, 8.507059e+37
        %v1020 = vand.u32 %v917, 2147483648
        %v1021 = vor.u32 1.1754944e-38, %v1020
        %v1022 = vsel %vm1019, %v1021, %v1017
        %v1023 = vmul.f32 %v861, %v1022
        %v1024 = vrcp.pop %v918
        %v1025 = vmul.f32 %v918, %v1024
        %v1026 = vsub.f32 1.0, %v1025
        %v1027 = vmul.f32 %v1024, %v1026
        %v1028 = vadd.f32 %v1024, %v1027
        %vm1029 = vweird.f32 %v918
        %vm1030 = vweird.f32 %v1024
        %vm1031 = vmor %vm1029, %vm1030
        %v1032 = vsel %vm1031, %v1024, %v1028
        %v1033 = vand.u32 2147483647, %v918
        %vm1034 = vcmp.eq.f32.partialorder %v1033, 8.507059e+37
        %v1035 = vand.u32 %v918, 2147483648
        %v1036 = vor.u32 1.1754944e-38, %v1035
        %v1037 = vsel %vm1034, %v1036, %v1032
        %v1038 = vmul.f32 %v862, %v1037
        %v1039 = vld [vmem:[#allocation7] sm:$0xff]
        %v1040 = vld [vmem:[#allocation7 + $0x8] sm:$0xff]
        %v1041 = vld [vmem:[#allocation7 + $0x10] sm:$0xff]
        %v1042 = vld [vmem:[#allocation7 + $0x18] sm:$0xff]
        %v1044 = vsel %vm562, %v554, 0
        %v1047 = vsel %vm562, %v555, 0
        %v1050 = vsel %vm562, %v556, 0
        %v1053 = vsel %vm562, %v557, 0
        %v1056 = vsel %vm562, %v558, 0
        %v1059 = vsel %vm562, %v559, 0
        %v1062 = vsel %vm562, %v560, 0
        %v1065 = vsel %vm562, %v561, 0
        %1067 = vmatpush.msra.mxu0 0.0
        %1068 = vmatpush.msra.mxu0 0.0
        %1069 = vmatpush.msra.mxu0 0.0
        %1070 = vmatpush.msra.mxu0 0.0
        %1071 = vmatpush.msra.mxu0 0.0
        %1072 = vmatpush.msra.mxu0 0.0
        %1073 = vmatpush.msra.mxu0 0.0
        %1074 = vmatpush.msra.mxu0 0.0
        %1075 = vmatpush.msra.mxu0 0.0
        %1076 = vmatpush.msra.mxu0 0.0
        %1077 = vmatpush.msra.mxu0 0.0
        %1078 = vmatpush.msra.mxu0 0.0
        %1079 = vmatpush.msra.mxu0 %v1042
        %1080 = vmatpush.msra.mxu0 %v1041
        %1081 = vmatpush.msra.mxu0 %v1040
        %1082 = vmatpush.msra.mxu0 %v1039
        %1083 = vmatmul.f32.gmra.mxu0 %v1044
        %v1084 = vpop.f32.mrf.mxu0
        %v1085 = vadd.f32 0.0, %v1084
        %1086 = vmatmul.f32.gmra.mxu0 %v1047
        %v1087 = vpop.f32.mrf.mxu0
        %v1088 = vadd.f32 0.0, %v1087
        %1089 = vmatmul.f32.gmra.mxu0 %v1050
        %v1090 = vpop.f32.mrf.mxu0
        %v1091 = vadd.f32 0.0, %v1090
        %1092 = vmatmul.f32.gmra.mxu0 %v1053
        %v1093 = vpop.f32.mrf.mxu0
        %v1094 = vadd.f32 0.0, %v1093
        %1095 = vmatmul.f32.gmra.mxu0 %v1056
        %v1096 = vpop.f32.mrf.mxu0
        %v1097 = vadd.f32 0.0, %v1096
        %1098 = vmatmul.f32.gmra.mxu0 %v1059
        %v1099 = vpop.f32.mrf.mxu0
        %v1100 = vadd.f32 0.0, %v1099
        %1101 = vmatmul.f32.gmra.mxu0 %v1062
        %v1102 = vpop.f32.mrf.mxu0
        %v1103 = vadd.f32 0.0, %v1102
        %1104 = vmatmul.f32.gmra.mxu0 %v1065
        %v1105 = vpop.f32.mrf.mxu0
        %v1106 = vadd.f32 0.0, %v1105
        %1107 = vdwg.mxu0
        %v1108 = vld [vmem:[%s6] sm:$0x1]
        %v1110 = vperm.slane %v1108, 0
        %v1112 = vadd.f32 %v1085, %v1110
        %v1113 = vadd.f32 %v1088, %v1110
        %v1114 = vadd.f32 %v1091, %v1110
        %v1115 = vadd.f32 %v1094, %v1110
        %v1116 = vadd.f32 %v1097, %v1110
        %v1117 = vadd.f32 %v1100, %v1110
        %v1118 = vadd.f32 %v1103, %v1110
        %v1119 = vadd.f32 %v1106, %v1110
        %v1120 = vmul.f32 %v933, %v1112
        %v1121 = vmul.f32 %v948, %v1113
        %v1122 = vmul.f32 %v963, %v1114
        %v1123 = vmul.f32 %v978, %v1115
        %v1124 = vmul.f32 %v993, %v1116
        %v1125 = vmul.f32 %v1008, %v1117
        %v1126 = vmul.f32 %v1023, %v1118
        %v1127 = vmul.f32 %v1038, %v1119
        %v1128 = vsel %vm562, %v1120, 0.0
        %v1129 = vrot.slane %v1128, 4
        %v1130 = vadd.f32 %v1128, %v1129
        %v1131 = vrot.slane %v1130, 2
        %v1132 = vadd.f32 %v1130, %v1131
        %v1133 = vrot.slane %v1132, 1
        %v1134 = vadd.f32 %v1132, %v1133
        %v1135 = vsel %vm562, %v1121, 0.0
        %v1136 = vrot.slane %v1135, 4
        %v1137 = vadd.f32 %v1135, %v1136
        %v1138 = vrot.slane %v1137, 2
        %v1139 = vadd.f32 %v1137, %v1138
        %v1140 = vrot.slane %v1139, 1
        %v1141 = vadd.f32 %v1139, %v1140
        %v1142 = vsel %vm562, %v1122, 0.0
        %v1143 = vrot.slane %v1142, 4
        %v1144 = vadd.f32 %v1142, %v1143
        %v1145 = vrot.slane %v1144, 2
        %v1146 = vadd.f32 %v1144, %v1145
        %v1147 = vrot.slane %v1146, 1
        %v1148 = vadd.f32 %v1146, %v1147
        %v1149 = vsel %vm562, %v1123, 0.0
        %v1150 = vrot.slane %v1149, 4
        %v1151 = vadd.f32 %v1149, %v1150
        %v1152 = vrot.slane %v1151, 2
        %v1153 = vadd.f32 %v1151, %v1152
        %v1154 = vrot.slane %v1153, 1
        %v1155 = vadd.f32 %v1153, %v1154
        %v1156 = vsel %vm562, %v1124, 0.0
        %v1157 = vrot.slane %v1156, 4
        %v1158 = vadd.f32 %v1156, %v1157
        %v1159 = vrot.slane %v1158, 2
        %v1160 = vadd.f32 %v1158, %v1159
        %v1161 = vrot.slane %v1160, 1
        %v1162 = vadd.f32 %v1160, %v1161
        %v1163 = vsel %vm562, %v1125, 0.0
        %v1164 = vrot.slane %v1163, 4
        %v1165 = vadd.f32 %v1163, %v1164
        %v1166 = vrot.slane %v1165, 2
        %v1167 = vadd.f32 %v1165, %v1166
        %v1168 = vrot.slane %v1167, 1
        %v1169 = vadd.f32 %v1167, %v1168
        %v1170 = vsel %vm562, %v1126, 0.0
        %v1171 = vrot.slane %v1170, 4
        %v1172 = vadd.f32 %v1170, %v1171
        %v1173 = vrot.slane %v1172, 2
        %v1174 = vadd.f32 %v1172, %v1173
        %v1175 = vrot.slane %v1174, 1
        %v1176 = vadd.f32 %v1174, %v1175
        %v1177 = vsel %vm562, %v1127, 0.0
        %v1178 = vrot.slane %v1177, 4
        %v1179 = vadd.f32 %v1177, %v1178
        %v1180 = vrot.slane %v1179, 2
        %v1181 = vadd.f32 %v1179, %v1180
        %v1182 = vrot.slane %v1181, 1
        %v1183 = vadd.f32 %v1181, %v1182
        %vm1184 = vcmp.gt.f32.partialorder %v1134, 0.0
        %vm1185 = vcmp.gt.f32.partialorder %v1141, 0.0
        %vm1186 = vcmp.gt.f32.partialorder %v1148, 0.0
        %vm1187 = vcmp.gt.f32.partialorder %v1155, 0.0
        %vm1188 = vcmp.gt.f32.partialorder %v1162, 0.0
        %vm1189 = vcmp.gt.f32.partialorder %v1169, 0.0
        %vm1190 = vcmp.gt.f32.partialorder %v1176, 0.0
        %vm1191 = vcmp.gt.f32.partialorder %v1183, 0.0
        %v1192 = vmin.f32 %v1134, 0.0
        %v1193 = vmin.f32 %v1141, 0.0
        %v1194 = vmin.f32 %v1148, 0.0
        %v1195 = vmin.f32 %v1155, 0.0
        %v1196 = vmin.f32 %v1162, 0.0
        %v1197 = vmin.f32 %v1169, 0.0
        %v1198 = vmin.f32 %v1176, 0.0
        %v1199 = vmin.f32 %v1183, 0.0
        %v1200 = vmul.f32 %v1192, 1.442695
        %v1201 = vpow.pop %v1200
        %v1202 = vmul.f32 %v1193, 1.442695
        %v1203 = vpow.pop %v1202
        %v1204 = vmul.f32 %v1194, 1.442695
        %v1205 = vpow.pop %v1204
        %v1206 = vmul.f32 %v1195, 1.442695
        %v1207 = vpow.pop %v1206
        %v1208 = vmul.f32 %v1196, 1.442695
        %v1209 = vpow.pop %v1208
        %v1210 = vmul.f32 %v1197, 1.442695
        %v1211 = vpow.pop %v1210
        %v1212 = vmul.f32 %v1198, 1.442695
        %v1213 = vpow.pop %v1212
        %v1214 = vmul.f32 %v1199, 1.442695
        %v1215 = vpow.pop %v1214
        %v1216 = vsub.f32 %v1201, 1.0
        %v1217 = vsub.f32 %v1203, 1.0
        %v1218 = vsub.f32 %v1205, 1.0
        %v1219 = vsub.f32 %v1207, 1.0
        %v1220 = vsub.f32 %v1209, 1.0
        %v1221 = vsub.f32 %v1211, 1.0
        %v1222 = vsub.f32 %v1213, 1.0
        %v1223 = vsub.f32 %v1215, 1.0
        %v1224 = vsel %vm1184, %v1134, %v1216
        %v1225 = vsel %vm1185, %v1141, %v1217
        %v1226 = vsel %vm1186, %v1148, %v1218
        %v1227 = vsel %vm1187, %v1155, %v1219
        %v1228 = vsel %vm1188, %v1162, %v1220
        %v1229 = vsel %vm1189, %v1169, %v1221
        %v1230 = vsel %vm1190, %v1176, %v1222
        %v1231 = vsel %vm1191, %v1183, %v1223
        %v1232 = vld [vmem:[#allocation9] sm:$0xff]
        %v1233 = vld [vmem:[#allocation9 + $0x8] sm:$0xff]
        %v1234 = vld [vmem:[#allocation9 + $0x10] sm:$0xff]
        %v1235 = vld [vmem:[#allocation9 + $0x18] sm:$0xff]
        %v1236 = vld [vmem:[%s8] sm:$0x1]
        %v1238 = vperm.slane %v1236, 0
        %v1248 = vsel %vm648, %v1225, %v1224
        %v1249 = vsel %vm651, %v1226, %v1248
        %v1250 = vsel %vm654, %v1227, %v1249
        %v1251 = vsel %vm657, %v1228, %v1250
        %v1252 = vsel %vm660, %v1229, %v1251
        %v1253 = vsel %vm663, %v1230, %v1252
        %v1254 = vsel %vm666, %v1231, %v1253
        %v1255 = vsel %vm562, %v1254, 0
        %1257 = vmatpush.msra.mxu0 0.0
        %1258 = vmatpush.msra.mxu0 0.0
        %1259 = vmatpush.msra.mxu0 0.0
        %1260 = vmatpush.msra.mxu0 0.0
        %1261 = vmatpush.msra.mxu0 0.0
        %1262 = vmatpush.msra.mxu0 0.0
        %1263 = vmatpush.msra.mxu0 0.0
        %1264 = vmatpush.msra.mxu0 0.0
        %1265 = vmatpush.msra.mxu0 0.0
        %1266 = vmatpush.msra.mxu0 0.0
        %1267 = vmatpush.msra.mxu0 0.0
        %1268 = vmatpush.msra.mxu0 0.0
        %1269 = vmatpush.msra.mxu0 %v1235
        %1270 = vmatpush.msra.mxu0 %v1234
        %1271 = vmatpush.msra.mxu0 %v1233
        %1272 = vmatpush.msra.mxu0 %v1232
        %1273 = vmatmul.f32.gmra.mxu0 %v1255
        %v1274 = vpop.f32.mrf.mxu0
        %v1275 = vadd.f32 %v1238, %v1274
        %1276 = vdwg.mxu0
        %v1277 = vld [vmem:[#allocation10] sm:$0xff]
        %v1278 = vld [vmem:[#allocation10 + $0x8] sm:$0xff]
        %v1279 = vld [vmem:[#allocation10 + $0x10] sm:$0xff]
        %v1280 = vld [vmem:[#allocation10 + $0x18] sm:$0xff]
        %v1281 = vld [vmem:[%s10] sm:$0x1]
        %v1283 = vperm.slane %v1281, 0
        %v1293 = vsel %vm648, %v576, %v569
        %v1294 = vsel %vm651, %v583, %v1293
        %v1295 = vsel %vm654, %v590, %v1294
        %v1296 = vsel %vm657, %v597, %v1295
        %v1297 = vsel %vm660, %v604, %v1296
        %v1298 = vsel %vm663, %v611, %v1297
        %v1299 = vsel %vm666, %v618, %v1298
        %v1300 = vsel %vm562, %v1299, 0
        %1302 = vmatpush.msra.mxu0 0.0
        %1303 = vmatpush.msra.mxu0 0.0
        %1304 = vmatpush.msra.mxu0 0.0
        %1305 = vmatpush.msra.mxu0 0.0
        %1306 = vmatpush.msra.mxu0 0.0
        %1307 = vmatpush.msra.mxu0 0.0
        %1308 = vmatpush.msra.mxu0 0.0
        %1309 = vmatpush.msra.mxu0 0.0
        %1310 = vmatpush.msra.mxu0 0.0
        %1311 = vmatpush.msra.mxu0 0.0
        %1312 = vmatpush.msra.mxu0 0.0
        %1313 = vmatpush.msra.mxu0 0.0
        %1314 = vmatpush.msra.mxu0 %v1280
        %1315 = vmatpush.msra.mxu0 %v1279
        %1316 = vmatpush.msra.mxu0 %v1278
        %1317 = vmatpush.msra.mxu0 %v1277
        %1318 = vmatmul.f32.gmra.mxu0 %v1300
        %v1319 = vpop.f32.mrf.mxu0
        %v1320 = vadd.f32 %v1283, %v1319
        %1321 = vdwg.mxu0
        %v1322 = vadd.f32 %v1275, %v1320
        %v1323 = vxor.u32 %v1322, 2147483648
        %v1324 = vmul.f32 %v1323, 1.442695
        %v1325 = vpow.pop %v1324
        %v1326 = vadd.f32 %v1325, 1.0
        %v1327 = vrcp.pop %v1326
        %v1328 = vmul.f32 %v1326, %v1327
        %v1329 = vsub.f32 1.0, %v1328
        %v1330 = vmul.f32 %v1327, %v1329
        %v1331 = vadd.f32 %v1327, %v1330
        %vm1332 = vweird.f32 %v1326
        %vm1333 = vweird.f32 %v1327
        %vm1334 = vmor %vm1332, %vm1333
        %v1335 = vsel %vm1334, %v1327, %v1331
        %v1336 = vand.u32 2147483647, %v1326
        %vm1337 = vcmp.eq.f32.partialorder %v1336, 8.507059e+37
        %v1338 = vand.u32 %v1326, 2147483648
        %v1339 = vor.u32 1.1754944e-38, %v1338
        %v1340 = vsel %vm1337, %v1339, %v1335
        %v1341 = vmul.f32 1.0, %v1340
        %1343 = vrot.lane.b32.xlu0 %v1320, 64
        %v1344 = vpop.permute.xlu0 %1343
        %v1346 = vmul.f32 %v1341, %v1344
        %1348 = vrot.lane.b32.xlu0 %v1346, 64
        %v1349 = vpop.permute.xlu0 %1348
        %v1351 = vadd.f32 %v1275, %v1349
        %v1352 = vtanh.pop %v1351
        %v1353 = vsub.f32 1.0, %v1341
        %1355 = vrot.lane.b32.xlu0 %v1352, 96
        %v1356 = vpop.permute.xlu0 %1355
        %v1358 = vmul.f32 %v1353, %v1356
        %1359 = vrot.lane.b32.xlu0 %v1299, 32
        %v1360 = vpop.permute.xlu0 %1359
        %v1362 = vmul.f32 %v1341, %v1360
        %v1363 = vadd.f32 %v1358, %v1362
        %v1364 = vmax.f32 %v1363, 0.0
        %s1365 = scalar_lea.vmem %s2, 1
        %v1366 = vld [vmem:[%s1365] sm:$0x1]
        %v1368 = vperm.slane %v1366, 0
        %1369 = vrot.lane.b32.xlu0 %v1368, 32
        %v1370 = vpop.permute.xlu0 %1369
        %v1372 = vmul.f32 %v1364, %v1370
        %1374 = vrot.lane.b32.xlu0 %v1372, 96
        %v1375 = vpop.permute.xlu0 %1374
        %v1377 = vsel %vm562, %v1375, 0.0
        %1378 = vadd.xlane.f32.xlu0 %v1377
        %v1379 = vpop.xlane.xlu0 %1378
        %s1380 = scalar_lea.vmem %s3, 1
        %v1381 = vld [vmem:[%s1380] sm:$0x1]
        %v1383 = vperm.slane %v1381, 0
        %v1385 = vmul.f32 %v489, %v1383
        %v1386 = vmul.f32 %v490, %v1383
        %v1387 = vmul.f32 %v491, %v1383
        %v1388 = vmul.f32 %v492, %v1383
        %v1389 = vmul.f32 %v493, %v1383
        %v1390 = vmul.f32 %v494, %v1383
        %v1391 = vmul.f32 %v495, %v1383
        %v1392 = vmul.f32 %v496, %v1383
        %v1393 = vsel %vm562, %v1385, 0.0
        %1394 = vadd.xlane.f32.xlu0 %v1393
        %v1395 = vpop.xlane.xlu0 %1394
        %v1396 = vsel %vm562, %v1386, 0.0
        %1397 = vadd.xlane.f32.xlu0 %v1396
        %v1398 = vpop.xlane.xlu0 %1397
        %v1399 = vsel %vm562, %v1387, 0.0
        %1400 = vadd.xlane.f32.xlu0 %v1399
        %v1401 = vpop.xlane.xlu0 %1400
        %v1402 = vsel %vm562, %v1388, 0.0
        %1403 = vadd.xlane.f32.xlu0 %v1402
        %v1404 = vpop.xlane.xlu0 %1403
        %v1405 = vsel %vm562, %v1389, 0.0
        %1406 = vadd.xlane.f32.xlu0 %v1405
        %v1407 = vpop.xlane.xlu0 %1406
        %v1408 = vsel %vm562, %v1390, 0.0
        %1409 = vadd.xlane.f32.xlu0 %v1408
        %v1410 = vpop.xlane.xlu0 %1409
        %v1411 = vsel %vm562, %v1391, 0.0
        %1412 = vadd.xlane.f32.xlu0 %v1411
        %v1413 = vpop.xlane.xlu0 %1412
        %v1414 = vsel %vm562, %v1392, 0.0
        %1415 = vadd.xlane.f32.xlu0 %v1414
        %v1416 = vpop.xlane.xlu0 %1415
        %v1418 = vperm.slane %v1379, 0
        %v1419 = vperm.slane %v1379, 1
        %v1420 = vperm.slane %v1379, 2
        %v1421 = vperm.slane %v1379, 3
        %v1422 = vperm.slane %v1379, 4
        %v1423 = vperm.slane %v1379, 5
        %v1424 = vperm.slane %v1379, 6
        %v1425 = vperm.slane %v1379, 7
        %v1434 = vadd.f32 %v1395, %v1418
        %v1435 = vadd.f32 %v1398, %v1419
        %v1436 = vadd.f32 %v1401, %v1420
        %v1437 = vadd.f32 %v1404, %v1421
        %v1438 = vadd.f32 %v1407, %v1422
        %v1439 = vadd.f32 %v1410, %v1423
        %v1440 = vadd.f32 %v1413, %v1424
        %v1441 = vadd.f32 %v1416, %v1425
        %s1442 = sld [smem:[#allocation6 + $0x1]]
        %v1443 = vstv %s1442
        %v1444 = vadd.f32 %v1434, %v1443
        %v1445 = vadd.f32 %v1435, %v1443
        %v1446 = vadd.f32 %v1436, %v1443
        %v1447 = vadd.f32 %v1437, %v1443
        %v1448 = vadd.f32 %v1438, %v1443
        %v1449 = vadd.f32 %v1439, %v1443
        %v1450 = vadd.f32 %v1440, %v1443
        %v1451 = vadd.f32 %v1441, %v1443
        %vm1452 = vcmp.ge.f32.partialorder %v1444, 0.0
        %vm1453 = vcmp.ge.f32.partialorder %v1445, 0.0
        %vm1454 = vcmp.ge.f32.partialorder %v1446, 0.0
        %vm1455 = vcmp.ge.f32.partialorder %v1447, 0.0
        %vm1456 = vcmp.ge.f32.partialorder %v1448, 0.0
        %vm1457 = vcmp.ge.f32.partialorder %v1449, 0.0
        %vm1458 = vcmp.ge.f32.partialorder %v1450, 0.0
        %vm1459 = vcmp.ge.f32.partialorder %v1451, 0.0
        %v1460 = vmul.f32 %v1444, 0.01
        %v1461 = vmul.f32 %v1445, 0.01
        %v1462 = vmul.f32 %v1446, 0.01
        %v1463 = vmul.f32 %v1447, 0.01
        %v1464 = vmul.f32 %v1448, 0.01
        %v1465 = vmul.f32 %v1449, 0.01
        %v1466 = vmul.f32 %v1450, 0.01
        %v1467 = vmul.f32 %v1451, 0.01
        %v1468 = vsel %vm1452, %v1444, %v1460
        %v1469 = vsel %vm1453, %v1445, %v1461
        %v1470 = vsel %vm1454, %v1446, %v1462
        %v1471 = vsel %vm1455, %v1447, %v1463
        %v1472 = vsel %vm1456, %v1448, %v1464
        %v1473 = vsel %vm1457, %v1449, %v1465
        %v1474 = vsel %vm1458, %v1450, %v1466
        %v1475 = vsel %vm1459, %v1451, %v1467
        %v1476 = vsel %vm767, %v1468, -1e+30
        %v1477 = vsel %vm768, %v1469, -1e+30
        %v1478 = vsel %vm769, %v1470, -1e+30
        %v1479 = vsel %vm770, %v1471, -1e+30
        %v1480 = vsel %vm771, %v1472, -1e+30
        %v1481 = vsel %vm772, %v1473, -1e+30
        %v1482 = vsel %vm773, %v1474, -1e+30
        %v1483 = vsel %vm774, %v1475, -1e+30
        %v1484 = vrot.slane %v1476, 4
        %v1485 = vmax.f32 %v1476, %v1484
        %v1486 = vrot.slane %v1485, 2
        %v1487 = vmax.f32 %v1485, %v1486
        %v1488 = vrot.slane %v1487, 1
        %v1489 = vmax.f32 %v1487, %v1488
        %v1490 = vrot.slane %v1477, 4
        %v1491 = vmax.f32 %v1477, %v1490
        %v1492 = vrot.slane %v1491, 2
        %v1493 = vmax.f32 %v1491, %v1492
        %v1494 = vrot.slane %v1493, 1
        %v1495 = vmax.f32 %v1493, %v1494
        %v1496 = vrot.slane %v1478, 4
        %v1497 = vmax.f32 %v1478, %v1496
        %v1498 = vrot.slane %v1497, 2
        %v1499 = vmax.f32 %v1497, %v1498
        %v1500 = vrot.slane %v1499, 1
        %v1501 = vmax.f32 %v1499, %v1500
        %v1502 = vrot.slane %v1479, 4
        %v1503 = vmax.f32 %v1479, %v1502
        %v1504 = vrot.slane %v1503, 2
        %v1505 = vmax.f32 %v1503, %v1504
        %v1506 = vrot.slane %v1505, 1
        %v1507 = vmax.f32 %v1505, %v1506
        %v1508 = vrot.slane %v1480, 4
        %v1509 = vmax.f32 %v1480, %v1508
        %v1510 = vrot.slane %v1509, 2
        %v1511 = vmax.f32 %v1509, %v1510
        %v1512 = vrot.slane %v1511, 1
        %v1513 = vmax.f32 %v1511, %v1512
        %v1514 = vrot.slane %v1481, 4
        %v1515 = vmax.f32 %v1481, %v1514
        %v1516 = vrot.slane %v1515, 2
        %v1517 = vmax.f32 %v1515, %v1516
        %v1518 = vrot.slane %v1517, 1
        %v1519 = vmax.f32 %v1517, %v1518
        %v1520 = vrot.slane %v1482, 4
        %v1521 = vmax.f32 %v1482, %v1520
        %v1522 = vrot.slane %v1521, 2
        %v1523 = vmax.f32 %v1521, %v1522
        %v1524 = vrot.slane %v1523, 1
        %v1525 = vmax.f32 %v1523, %v1524
        %v1526 = vrot.slane %v1483, 4
        %v1527 = vmax.f32 %v1483, %v1526
        %v1528 = vrot.slane %v1527, 2
        %v1529 = vmax.f32 %v1527, %v1528
        %v1530 = vrot.slane %v1529, 1
        %v1531 = vmax.f32 %v1529, %v1530
        %v1532 = vsub.f32 %v1476, %v1489
        %v1533 = vsub.f32 %v1477, %v1495
        %v1534 = vsub.f32 %v1478, %v1501
        %v1535 = vsub.f32 %v1479, %v1507
        %v1536 = vsub.f32 %v1480, %v1513
        %v1537 = vsub.f32 %v1481, %v1519
        %v1538 = vsub.f32 %v1482, %v1525
        %v1539 = vsub.f32 %v1483, %v1531
        %v1540 = vmul.f32 %v1532, 1.442695
        %v1541 = vpow.pop %v1540
        %v1542 = vmul.f32 %v1533, 1.442695
        %v1543 = vpow.pop %v1542
        %v1544 = vmul.f32 %v1534, 1.442695
        %v1545 = vpow.pop %v1544
        %v1546 = vmul.f32 %v1535, 1.442695
        %v1547 = vpow.pop %v1546
        %v1548 = vmul.f32 %v1536, 1.442695
        %v1549 = vpow.pop %v1548
        %v1550 = vmul.f32 %v1537, 1.442695
        %v1551 = vpow.pop %v1550
        %v1552 = vmul.f32 %v1538, 1.442695
        %v1553 = vpow.pop %v1552
        %v1554 = vmul.f32 %v1539, 1.442695
        %v1555 = vpow.pop %v1554
        %v1556 = vmul.f32 %v1541, %v504
        %v1557 = vmul.f32 %v1543, %v511
        %v1558 = vmul.f32 %v1545, %v518
        %v1559 = vmul.f32 %v1547, %v525
        %v1560 = vmul.f32 %v1549, %v532
        %v1561 = vmul.f32 %v1551, %v539
        %v1562 = vmul.f32 %v1553, %v546
        %v1563 = vmul.f32 %v1555, %v553
        %v1564 = vrot.slane %v1556, 4
        %v1565 = vadd.f32 %v1556, %v1564
        %v1566 = vrot.slane %v1565, 2
        %v1567 = vadd.f32 %v1565, %v1566
        %v1568 = vrot.slane %v1567, 1
        %v1569 = vadd.f32 %v1567, %v1568
        %v1570 = vrot.slane %v1557, 4
        %v1571 = vadd.f32 %v1557, %v1570
        %v1572 = vrot.slane %v1571, 2
        %v1573 = vadd.f32 %v1571, %v1572
        %v1574 = vrot.slane %v1573, 1
        %v1575 = vadd.f32 %v1573, %v1574
        %v1576 = vrot.slane %v1558, 4
        %v1577 = vadd.f32 %v1558, %v1576
        %v1578 = vrot.slane %v1577, 2
        %v1579 = vadd.f32 %v1577, %v1578
        %v1580 = vrot.slane %v1579, 1
        %v1581 = vadd.f32 %v1579, %v1580
        %v1582 = vrot.slane %v1559, 4
        %v1583 = vadd.f32 %v1559, %v1582
        %v1584 = vrot.slane %v1583, 2
        %v1585 = vadd.f32 %v1583, %v1584
        %v1586 = vrot.slane %v1585, 1
        %v1587 = vadd.f32 %v1585, %v1586
        %v1588 = vrot.slane %v1560, 4
        %v1589 = vadd.f32 %v1560, %v1588
        %v1590 = vrot.slane %v1589, 2
        %v1591 = vadd.f32 %v1589, %v1590
        %v1592 = vrot.slane %v1591, 1
        %v1593 = vadd.f32 %v1591, %v1592
        %v1594 = vrot.slane %v1561, 4
        %v1595 = vadd.f32 %v1561, %v1594
        %v1596 = vrot.slane %v1595, 2
        %v1597 = vadd.f32 %v1595, %v1596
        %v1598 = vrot.slane %v1597, 1
        %v1599 = vadd.f32 %v1597, %v1598
        %v1600 = vrot.slane %v1562, 4
        %v1601 = vadd.f32 %v1562, %v1600
        %v1602 = vrot.slane %v1601, 2
        %v1603 = vadd.f32 %v1601, %v1602
        %v1604 = vrot.slane %v1603, 1
        %v1605 = vadd.f32 %v1603, %v1604
        %v1606 = vrot.slane %v1563, 4
        %v1607 = vadd.f32 %v1563, %v1606
        %v1608 = vrot.slane %v1607, 2
        %v1609 = vadd.f32 %v1607, %v1608
        %v1610 = vrot.slane %v1609, 1
        %v1611 = vadd.f32 %v1609, %v1610
        %v1612 = vmax.f32 %v1569, 1e-30
        %v1613 = vmax.f32 %v1575, 1e-30
        %v1614 = vmax.f32 %v1581, 1e-30
        %v1615 = vmax.f32 %v1587, 1e-30
        %v1616 = vmax.f32 %v1593, 1e-30
        %v1617 = vmax.f32 %v1599, 1e-30
        %v1618 = vmax.f32 %v1605, 1e-30
        %v1619 = vmax.f32 %v1611, 1e-30
        %v1620 = vrcp.pop %v1612
        %v1621 = vmul.f32 %v1612, %v1620
        %v1622 = vsub.f32 1.0, %v1621
        %v1623 = vmul.f32 %v1620, %v1622
        %v1624 = vadd.f32 %v1620, %v1623
        %vm1625 = vweird.f32 %v1612
        %vm1626 = vweird.f32 %v1620
        %vm1627 = vmor %vm1625, %vm1626
        %v1628 = vsel %vm1627, %v1620, %v1624
        %v1629 = vand.u32 2147483647, %v1612
        %vm1630 = vcmp.eq.f32.partialorder %v1629, 8.507059e+37
        %v1631 = vand.u32 %v1612, 2147483648
        %v1632 = vor.u32 1.1754944e-38, %v1631
        %v1633 = vsel %vm1630, %v1632, %v1628
        %v1634 = vmul.f32 %v1556, %v1633
        %v1635 = vrcp.pop %v1613
        %v1636 = vmul.f32 %v1613, %v1635
        %v1637 = vsub.f32 1.0, %v1636
        %v1638 = vmul.f32 %v1635, %v1637
        %v1639 = vadd.f32 %v1635, %v1638
        %vm1640 = vweird.f32 %v1613
        %vm1641 = vweird.f32 %v1635
        %vm1642 = vmor %vm1640, %vm1641
        %v1643 = vsel %vm1642, %v1635, %v1639
        %v1644 = vand.u32 2147483647, %v1613
        %vm1645 = vcmp.eq.f32.partialorder %v1644, 8.507059e+37
        %v1646 = vand.u32 %v1613, 2147483648
        %v1647 = vor.u32 1.1754944e-38, %v1646
        %v1648 = vsel %vm1645, %v1647, %v1643
        %v1649 = vmul.f32 %v1557, %v1648
        %v1650 = vrcp.pop %v1614
        %v1651 = vmul.f32 %v1614, %v1650
        %v1652 = vsub.f32 1.0, %v1651
        %v1653 = vmul.f32 %v1650, %v1652
        %v1654 = vadd.f32 %v1650, %v1653
        %vm1655 = vweird.f32 %v1614
        %vm1656 = vweird.f32 %v1650
        %vm1657 = vmor %vm1655, %vm1656
        %v1658 = vsel %vm1657, %v1650, %v1654
        %v1659 = vand.u32 2147483647, %v1614
        %vm1660 = vcmp.eq.f32.partialorder %v1659, 8.507059e+37
        %v1661 = vand.u32 %v1614, 2147483648
        %v1662 = vor.u32 1.1754944e-38, %v1661
        %v1663 = vsel %vm1660, %v1662, %v1658
        %v1664 = vmul.f32 %v1558, %v1663
        %v1665 = vrcp.pop %v1615
        %v1666 = vmul.f32 %v1615, %v1665
        %v1667 = vsub.f32 1.0, %v1666
        %v1668 = vmul.f32 %v1665, %v1667
        %v1669 = vadd.f32 %v1665, %v1668
        %vm1670 = vweird.f32 %v1615
        %vm1671 = vweird.f32 %v1665
        %vm1672 = vmor %vm1670, %vm1671
        %v1673 = vsel %vm1672, %v1665, %v1669
        %v1674 = vand.u32 2147483647, %v1615
        %vm1675 = vcmp.eq.f32.partialorder %v1674, 8.507059e+37
        %v1676 = vand.u32 %v1615, 2147483648
        %v1677 = vor.u32 1.1754944e-38, %v1676
        %v1678 = vsel %vm1675, %v1677, %v1673
        %v1679 = vmul.f32 %v1559, %v1678
        %v1680 = vrcp.pop %v1616
        %v1681 = vmul.f32 %v1616, %v1680
        %v1682 = vsub.f32 1.0, %v1681
        %v1683 = vmul.f32 %v1680, %v1682
        %v1684 = vadd.f32 %v1680, %v1683
        %vm1685 = vweird.f32 %v1616
        %vm1686 = vweird.f32 %v1680
        %vm1687 = vmor %vm1685, %vm1686
        %v1688 = vsel %vm1687, %v1680, %v1684
        %v1689 = vand.u32 2147483647, %v1616
        %vm1690 = vcmp.eq.f32.partialorder %v1689, 8.507059e+37
        %v1691 = vand.u32 %v1616, 2147483648
        %v1692 = vor.u32 1.1754944e-38, %v1691
        %v1693 = vsel %vm1690, %v1692, %v1688
        %v1694 = vmul.f32 %v1560, %v1693
        %v1695 = vrcp.pop %v1617
        %v1696 = vmul.f32 %v1617, %v1695
        %v1697 = vsub.f32 1.0, %v1696
        %v1698 = vmul.f32 %v1695, %v1697
        %v1699 = vadd.f32 %v1695, %v1698
        %vm1700 = vweird.f32 %v1617
        %vm1701 = vweird.f32 %v1695
        %vm1702 = vmor %vm1700, %vm1701
        %v1703 = vsel %vm1702, %v1695, %v1699
        %v1704 = vand.u32 2147483647, %v1617
        %vm1705 = vcmp.eq.f32.partialorder %v1704, 8.507059e+37
        %v1706 = vand.u32 %v1617, 2147483648
        %v1707 = vor.u32 1.1754944e-38, %v1706
        %v1708 = vsel %vm1705, %v1707, %v1703
        %v1709 = vmul.f32 %v1561, %v1708
        %v1710 = vrcp.pop %v1618
        %v1711 = vmul.f32 %v1618, %v1710
        %v1712 = vsub.f32 1.0, %v1711
        %v1713 = vmul.f32 %v1710, %v1712
        %v1714 = vadd.f32 %v1710, %v1713
        %vm1715 = vweird.f32 %v1618
        %vm1716 = vweird.f32 %v1710
        %vm1717 = vmor %vm1715, %vm1716
        %v1718 = vsel %vm1717, %v1710, %v1714
        %v1719 = vand.u32 2147483647, %v1618
        %vm1720 = vcmp.eq.f32.partialorder %v1719, 8.507059e+37
        %v1721 = vand.u32 %v1618, 2147483648
        %v1722 = vor.u32 1.1754944e-38, %v1721
        %v1723 = vsel %vm1720, %v1722, %v1718
        %v1724 = vmul.f32 %v1562, %v1723
        %v1725 = vrcp.pop %v1619
        %v1726 = vmul.f32 %v1619, %v1725
        %v1727 = vsub.f32 1.0, %v1726
        %v1728 = vmul.f32 %v1725, %v1727
        %v1729 = vadd.f32 %v1725, %v1728
        %vm1730 = vweird.f32 %v1619
        %vm1731 = vweird.f32 %v1725
        %vm1732 = vmor %vm1730, %vm1731
        %v1733 = vsel %vm1732, %v1725, %v1729
        %v1734 = vand.u32 2147483647, %v1619
        %vm1735 = vcmp.eq.f32.partialorder %v1734, 8.507059e+37
        %v1736 = vand.u32 %v1619, 2147483648
        %v1737 = vor.u32 1.1754944e-38, %v1736
        %v1738 = vsel %vm1735, %v1737, %v1733
        %v1739 = vmul.f32 %v1563, %v1738
        %s1740 = scalar_lea.vmem [#allocation7], 32
        %v1741 = vld [vmem:[%s1740] sm:$0xff]
        %v1742 = vld [vmem:[%s1740 + $0x8] sm:$0xff]
        %v1743 = vld [vmem:[%s1740 + $0x10] sm:$0xff]
        %v1744 = vld [vmem:[%s1740 + $0x18] sm:$0xff]
        %1745 = vmatpush.msra.mxu0 0.0
        %1746 = vmatpush.msra.mxu0 0.0
        %1747 = vmatpush.msra.mxu0 0.0
        %1748 = vmatpush.msra.mxu0 0.0
        %1749 = vmatpush.msra.mxu0 0.0
        %1750 = vmatpush.msra.mxu0 0.0
        %1751 = vmatpush.msra.mxu0 0.0
        %1752 = vmatpush.msra.mxu0 0.0
        %1753 = vmatpush.msra.mxu0 0.0
        %1754 = vmatpush.msra.mxu0 0.0
        %1755 = vmatpush.msra.mxu0 0.0
        %1756 = vmatpush.msra.mxu0 0.0
        %1757 = vmatpush.msra.mxu0 %v1744
        %1758 = vmatpush.msra.mxu0 %v1743
        %1759 = vmatpush.msra.mxu0 %v1742
        %1760 = vmatpush.msra.mxu0 %v1741
        %1761 = vmatmul.f32.gmra.mxu0 %v1044
        %v1762 = vpop.f32.mrf.mxu0
        %v1763 = vadd.f32 0.0, %v1762
        %1764 = vmatmul.f32.gmra.mxu0 %v1047
        %v1765 = vpop.f32.mrf.mxu0
        %v1766 = vadd.f32 0.0, %v1765
        %1767 = vmatmul.f32.gmra.mxu0 %v1050
        %v1768 = vpop.f32.mrf.mxu0
        %v1769 = vadd.f32 0.0, %v1768
        %1770 = vmatmul.f32.gmra.mxu0 %v1053
        %v1771 = vpop.f32.mrf.mxu0
        %v1772 = vadd.f32 0.0, %v1771
        %1773 = vmatmul.f32.gmra.mxu0 %v1056
        %v1774 = vpop.f32.mrf.mxu0
        %v1775 = vadd.f32 0.0, %v1774
        %1776 = vmatmul.f32.gmra.mxu0 %v1059
        %v1777 = vpop.f32.mrf.mxu0
        %v1778 = vadd.f32 0.0, %v1777
        %1779 = vmatmul.f32.gmra.mxu0 %v1062
        %v1780 = vpop.f32.mrf.mxu0
        %v1781 = vadd.f32 0.0, %v1780
        %1782 = vmatmul.f32.gmra.mxu0 %v1065
        %v1783 = vpop.f32.mrf.mxu0
        %v1784 = vadd.f32 0.0, %v1783
        %1785 = vdwg.mxu0
        %s1786 = scalar_lea.vmem %s6, 1
        %v1787 = vld [vmem:[%s1786] sm:$0x1]
        %v1789 = vperm.slane %v1787, 0
        %v1791 = vadd.f32 %v1763, %v1789
        %v1792 = vadd.f32 %v1766, %v1789
        %v1793 = vadd.f32 %v1769, %v1789
        %v1794 = vadd.f32 %v1772, %v1789
        %v1795 = vadd.f32 %v1775, %v1789
        %v1796 = vadd.f32 %v1778, %v1789
        %v1797 = vadd.f32 %v1781, %v1789
        %v1798 = vadd.f32 %v1784, %v1789
        %v1799 = vmul.f32 %v1634, %v1791
        %v1800 = vmul.f32 %v1649, %v1792
        %v1801 = vmul.f32 %v1664, %v1793
        %v1802 = vmul.f32 %v1679, %v1794
        %v1803 = vmul.f32 %v1694, %v1795
        %v1804 = vmul.f32 %v1709, %v1796
        %v1805 = vmul.f32 %v1724, %v1797
        %v1806 = vmul.f32 %v1739, %v1798
        %v1807 = vsel %vm562, %v1799, 0.0
        %v1808 = vrot.slane %v1807, 4
        %v1809 = vadd.f32 %v1807, %v1808
        %v1810 = vrot.slane %v1809, 2
        %v1811 = vadd.f32 %v1809, %v1810
        %v1812 = vrot.slane %v1811, 1
        %v1813 = vadd.f32 %v1811, %v1812
        %v1814 = vsel %vm562, %v1800, 0.0
        %v1815 = vrot.slane %v1814, 4
        %v1816 = vadd.f32 %v1814, %v1815
        %v1817 = vrot.slane %v1816, 2
        %v1818 = vadd.f32 %v1816, %v1817
        %v1819 = vrot.slane %v1818, 1
        %v1820 = vadd.f32 %v1818, %v1819
        %v1821 = vsel %vm562, %v1801, 0.0
        %v1822 = vrot.slane %v1821, 4
        %v1823 = vadd.f32 %v1821, %v1822
        %v1824 = vrot.slane %v1823, 2
        %v1825 = vadd.f32 %v1823, %v1824
        %v1826 = vrot.slane %v1825, 1
        %v1827 = vadd.f32 %v1825, %v1826
        %v1828 = vsel %vm562, %v1802, 0.0
        %v1829 = vrot.slane %v1828, 4
        %v1830 = vadd.f32 %v1828, %v1829
        %v1831 = vrot.slane %v1830, 2
        %v1832 = vadd.f32 %v1830, %v1831
        %v1833 = vrot.slane %v1832, 1
        %v1834 = vadd.f32 %v1832, %v1833
        %v1835 = vsel %vm562, %v1803, 0.0
        %v1836 = vrot.slane %v1835, 4
        %v1837 = vadd.f32 %v1835, %v1836
        %v1838 = vrot.slane %v1837, 2
        %v1839 = vadd.f32 %v1837, %v1838
        %v1840 = vrot.slane %v1839, 1
        %v1841 = vadd.f32 %v1839, %v1840
        %v1842 = vsel %vm562, %v1804, 0.0
        %v1843 = vrot.slane %v1842, 4
        %v1844 = vadd.f32 %v1842, %v1843
        %v1845 = vrot.slane %v1844, 2
        %v1846 = vadd.f32 %v1844, %v1845
        %v1847 = vrot.slane %v1846, 1
        %v1848 = vadd.f32 %v1846, %v1847
        %v1849 = vsel %vm562, %v1805, 0.0
        %v1850 = vrot.slane %v1849, 4
        %v1851 = vadd.f32 %v1849, %v1850
        %v1852 = vrot.slane %v1851, 2
        %v1853 = vadd.f32 %v1851, %v1852
        %v1854 = vrot.slane %v1853, 1
        %v1855 = vadd.f32 %v1853, %v1854
        %v1856 = vsel %vm562, %v1806, 0.0
        %v1857 = vrot.slane %v1856, 4
        %v1858 = vadd.f32 %v1856, %v1857
        %v1859 = vrot.slane %v1858, 2
        %v1860 = vadd.f32 %v1858, %v1859
        %v1861 = vrot.slane %v1860, 1
        %v1862 = vadd.f32 %v1860, %v1861
        %vm1863 = vcmp.gt.f32.partialorder %v1813, 0.0
        %vm1864 = vcmp.gt.f32.partialorder %v1820, 0.0
        %vm1865 = vcmp.gt.f32.partialorder %v1827, 0.0
        %vm1866 = vcmp.gt.f32.partialorder %v1834, 0.0
        %vm1867 = vcmp.gt.f32.partialorder %v1841, 0.0
        %vm1868 = vcmp.gt.f32.partialorder %v1848, 0.0
        %vm1869 = vcmp.gt.f32.partialorder %v1855, 0.0
        %vm1870 = vcmp.gt.f32.partialorder %v1862, 0.0
        %v1871 = vmin.f32 %v1813, 0.0
        %v1872 = vmin.f32 %v1820, 0.0
        %v1873 = vmin.f32 %v1827, 0.0
        %v1874 = vmin.f32 %v1834, 0.0
        %v1875 = vmin.f32 %v1841, 0.0
        %v1876 = vmin.f32 %v1848, 0.0
        %v1877 = vmin.f32 %v1855, 0.0
        %v1878 = vmin.f32 %v1862, 0.0
        %v1879 = vmul.f32 %v1871, 1.442695
        %v1880 = vpow.pop %v1879
        %v1881 = vmul.f32 %v1872, 1.442695
        %v1882 = vpow.pop %v1881
        %v1883 = vmul.f32 %v1873, 1.442695
        %v1884 = vpow.pop %v1883
        %v1885 = vmul.f32 %v1874, 1.442695
        %v1886 = vpow.pop %v1885
        %v1887 = vmul.f32 %v1875, 1.442695
        %v1888 = vpow.pop %v1887
        %v1889 = vmul.f32 %v1876, 1.442695
        %v1890 = vpow.pop %v1889
        %v1891 = vmul.f32 %v1877, 1.442695
        %v1892 = vpow.pop %v1891
        %v1893 = vmul.f32 %v1878, 1.442695
        %v1894 = vpow.pop %v1893
        %v1895 = vsub.f32 %v1880, 1.0
        %v1896 = vsub.f32 %v1882, 1.0
        %v1897 = vsub.f32 %v1884, 1.0
        %v1898 = vsub.f32 %v1886, 1.0
        %v1899 = vsub.f32 %v1888, 1.0
        %v1900 = vsub.f32 %v1890, 1.0
        %v1901 = vsub.f32 %v1892, 1.0
        %v1902 = vsub.f32 %v1894, 1.0
        %v1903 = vsel %vm1863, %v1813, %v1895
        %v1904 = vsel %vm1864, %v1820, %v1896
        %v1905 = vsel %vm1865, %v1827, %v1897
        %v1906 = vsel %vm1866, %v1834, %v1898
        %v1907 = vsel %vm1867, %v1841, %v1899
        %v1908 = vsel %vm1868, %v1848, %v1900
        %v1909 = vsel %vm1869, %v1855, %v1901
        %v1910 = vsel %vm1870, %v1862, %v1902
        %s1911 = scalar_lea.vmem [#allocation9], 32
        %v1912 = vld [vmem:[%s1911] sm:$0xff]
        %v1913 = vld [vmem:[%s1911 + $0x8] sm:$0xff]
        %v1914 = vld [vmem:[%s1911 + $0x10] sm:$0xff]
        %v1915 = vld [vmem:[%s1911 + $0x18] sm:$0xff]
        %s1916 = scalar_lea.vmem %s8, 1
        %v1917 = vld [vmem:[%s1916] sm:$0x1]
        %v1919 = vperm.slane %v1917, 0
        %v1929 = vsel %vm648, %v1904, %v1903
        %v1930 = vsel %vm651, %v1905, %v1929
        %v1931 = vsel %vm654, %v1906, %v1930
        %v1932 = vsel %vm657, %v1907, %v1931
        %v1933 = vsel %vm660, %v1908, %v1932
        %v1934 = vsel %vm663, %v1909, %v1933
        %v1935 = vsel %vm666, %v1910, %v1934
        %v1936 = vsel %vm562, %v1935, 0
        %1938 = vmatpush.msra.mxu0 0.0
        %1939 = vmatpush.msra.mxu0 0.0
        %1940 = vmatpush.msra.mxu0 0.0
        %1941 = vmatpush.msra.mxu0 0.0
        %1942 = vmatpush.msra.mxu0 0.0
        %1943 = vmatpush.msra.mxu0 0.0
        %1944 = vmatpush.msra.mxu0 0.0
        %1945 = vmatpush.msra.mxu0 0.0
        %1946 = vmatpush.msra.mxu0 0.0
        %1947 = vmatpush.msra.mxu0 0.0
        %1948 = vmatpush.msra.mxu0 0.0
        %1949 = vmatpush.msra.mxu0 0.0
        %1950 = vmatpush.msra.mxu0 %v1915
        %1951 = vmatpush.msra.mxu0 %v1914
        %1952 = vmatpush.msra.mxu0 %v1913
        %1953 = vmatpush.msra.mxu0 %v1912
        %1954 = vmatmul.f32.gmra.mxu0 %v1936
        %v1955 = vpop.f32.mrf.mxu0
        %v1956 = vadd.f32 %v1919, %v1955
        %1957 = vdwg.mxu0
        %s1958 = scalar_lea.vmem [#allocation10], 32
        %v1959 = vld [vmem:[%s1958] sm:$0xff]
        %v1960 = vld [vmem:[%s1958 + $0x8] sm:$0xff]
        %v1961 = vld [vmem:[%s1958 + $0x10] sm:$0xff]
        %v1962 = vld [vmem:[%s1958 + $0x18] sm:$0xff]
        %s1963 = scalar_lea.vmem %s10, 1
        %v1964 = vld [vmem:[%s1963] sm:$0x1]
        %v1966 = vperm.slane %v1964, 0
        %1969 = vrot.lane.b32.xlu0 %v1363, 96
        %v1970 = vpop.permute.xlu0 %1969
        %v1971 = vsel %vm562, %v1970, 0
        %1973 = vmatpush.msra.mxu0 0.0
        %1974 = vmatpush.msra.mxu0 0.0
        %1975 = vmatpush.msra.mxu0 0.0
        %1976 = vmatpush.msra.mxu0 0.0
        %1977 = vmatpush.msra.mxu0 0.0
        %1978 = vmatpush.msra.mxu0 0.0
        %1979 = vmatpush.msra.mxu0 0.0
        %1980 = vmatpush.msra.mxu0 0.0
        %1981 = vmatpush.msra.mxu0 0.0
        %1982 = vmatpush.msra.mxu0 0.0
        %1983 = vmatpush.msra.mxu0 0.0
        %1984 = vmatpush.msra.mxu0 0.0
        %1985 = vmatpush.msra.mxu0 %v1962
        %1986 = vmatpush.msra.mxu0 %v1961
        %1987 = vmatpush.msra.mxu0 %v1960
        %1988 = vmatpush.msra.mxu0 %v1959
        %1989 = vmatmul.f32.gmra.mxu0 %v1971
        %v1990 = vpop.f32.mrf.mxu0
        %v1991 = vadd.f32 %v1966, %v1990
        %1992 = vdwg.mxu0
        %v1993 = vadd.f32 %v1956, %v1991
        %v1994 = vxor.u32 %v1993, 2147483648
        %v1995 = vmul.f32 %v1994, 1.442695
        %v1996 = vpow.pop %v1995
        %v1997 = vadd.f32 %v1996, 1.0
        %v1998 = vrcp.pop %v1997
        %v1999 = vmul.f32 %v1997, %v1998
        %v2000 = vsub.f32 1.0, %v1999
        %v2001 = vmul.f32 %v1998, %v2000
        %v2002 = vadd.f32 %v1998, %v2001
        %vm2003 = vweird.f32 %v1997
        %vm2004 = vweird.f32 %v1998
        %vm2005 = vmor %vm2003, %vm2004
        %v2006 = vsel %vm2005, %v1998, %v2002
        %v2007 = vand.u32 2147483647, %v1997
        %vm2008 = vcmp.eq.f32.partialorder %v2007, 8.507059e+37
        %v2009 = vand.u32 %v1997, 2147483648
        %v2010 = vor.u32 1.1754944e-38, %v2009
        %v2011 = vsel %vm2008, %v2010, %v2006
        %v2012 = vmul.f32 1.0, %v2011
        %2014 = vrot.lane.b32.xlu0 %v1991, 64
        %v2015 = vpop.permute.xlu0 %2014
        %v2017 = vmul.f32 %v2012, %v2015
        %2019 = vrot.lane.b32.xlu0 %v2017, 64
        %v2020 = vpop.permute.xlu0 %2019
        %v2022 = vadd.f32 %v1956, %v2020
        %v2023 = vtanh.pop %v2022
        %v2024 = vsub.f32 1.0, %v2012
        %2026 = vrot.lane.b32.xlu0 %v2023, 96
        %v2027 = vpop.permute.xlu0 %2026
        %v2029 = vmul.f32 %v2024, %v2027
        %v2030 = vmul.f32 %v2012, %v1363
        %v2031 = vadd.f32 %v2029, %v2030
        %2033 = vrot.lane.b32.xlu0 %v2031, 96
        %v2034 = vpop.permute.xlu0 %2033
        %2036 = vst.msk [vmem:[%s483] sm:$0xff] %vm562, %v2034
        %s2037 = sand.u32 %s280, 1
        %s2038 = scalar_lea.sflag [#allocation4], %s2037
        %s2039 = sand.u32 %s280, 1
        %s2040 = smul.addr %s2039, 8
        %s2041 = scalar_lea.vmem [#allocation12], %s2040
        // Predicated region
        $region85: #{tpu_custom_call.1} parent=63 // pred_check
          %p2042 = pneg %p290
        $region86: #{tpu_custom_call.1} parent=63 // pred_check_branch
          %2044 = sbr.rel (%p2042) target = $region88
        $region87: #{tpu_custom_call.1} parent=63 // pred_region
          %2046 = vsyncadd %s2038, 0
          %s2047 = smul.addr %s31, 8
          %s2048 = scalar_lea.hbm %s11, %s2047
          %s2050 = sshll.u32 %s2041, 4
          %s2051 = int_to_ptr.vmem [resolvable:$true] %s2050
          %s2052 = sshll.u32 %s2048, 4
          %s2053 = int_to_ptr.hbm [resolvable:$true] %s2052
          %2055 = dma.vmem_to_hbm [thread:$0]  %s2051, 128, %s2053, %s2038
        $region88: #{tpu_custom_call.1} parent=63 // pred_fallthru
          _
      $region64: #{tpu_custom_call.1} parent=5 // pred_fallthru
        _
      %p2056 = scmp.le.s32.totalorder 2, %s26
      // Predicated region
      $region89: #{tpu_custom_call.1} parent=5 // pred_check
        %p2057 = pneg %p2056
      $region90: #{tpu_custom_call.1} parent=5 // pred_check_branch
        %2059 = sbr.rel (%p2057) target = $region92
      $region91: #{tpu_custom_call.1} parent=5 // pred_region
        %s2060 = ssub.s32 %s26, 2
        // Predicated region
        $region93: #{tpu_custom_call.1} parent=91 // pred_check
          %p2061 = pneg %p296
        $region94: #{tpu_custom_call.1} parent=91 // pred_check_branch
          %2063 = sbr.rel (%p2061) target = $region96
        $region95: #{tpu_custom_call.1} parent=91 // pred_region
          %s2064 = sand.u32 %s281, 1
          %s2065 = scalar_lea.sflag [#allocation4], %s2064
          %s2066 = sand.u32 %s281, 1
          %s2067 = smul.addr %s2066, 8
          %s2068 = scalar_lea.vmem [#allocation12], %s2067
          %2070 = dma.done %s2065, 128
        $region96: #{tpu_custom_call.1} parent=91 // pred_fallthru
          _
      $region92: #{tpu_custom_call.1} parent=5 // pred_fallthru
        _
    $region6: #{tpu_custom_call.1} parent=1 // loop_footer
      %s30 = sadd.s32 1, %s26
    $region7: #{tpu_custom_call.1} parent=1 // loop_footer_branch
      %25 = sbr.rel target = $region3
    $region8: #{tpu_custom_call.1} parent=1 // loop_exit
      _
    %2071 = vsyncpa [#allocation3], 1
    %s2072 = scalar_lea.sflag [#allocation3], 1
    %2073 = vsyncpa %s2072, 1
    %2074 = vsyncpa [#allocation8], 1
    %2075 = vsyncpa [#allocation11], 1
    %2076 = vsyncpa [#allocation4], 1
    %s2077 = scalar_lea.sflag [#allocation4], 1
    %2078 = vsyncpa %s2077, 1
    %2079 = vsyncpa [#allocation5], 1
    %s2080 = scalar_lea.sflag [#allocation5], 1
    %2081 = vsyncpa %s2080, 1

</llo_original>
